<compile_context>
chip_gen: v5e
topology: v5e:2x2
jax: 0.10.0
libtpu: 0.0.40
codegen_flags: <defaults>
</compile_context>

<pallas_src>
import jax
import jax.numpy as jnp
from jax.experimental import pallas as pl
from jax.experimental.pallas import tpu as pltpu


def _round_up(v, m):
    return (v + m - 1) // m * m


def _hgnn_fused_kernel(x_ref, h_ref, ht_ref, dinv_ref, binv_ref,
                       w_ref, b_ref, o_ref):
    """One grid step == one HypergraphConv layer (+ fused bias / ReLU)."""
    layer = pl.program_id(0)

    @pl.when(layer == 0)
    def _init():
        # Seed the carried activation with the (padded) input features.
        o_ref[...] = x_ref[...]

    h = o_ref[...]                    # [Np, Cp] f32 carried activation
    W = w_ref[0]                      # [Cp, Cp] this layer's Theta
    bias = b_ref[0]                   # [1, Cp]

    # X' = X @ Theta  (small [Np,Cp]x[Cp,Cp] f32 MXU pass).
    xw = jnp.dot(h, W, preferred_element_type=jnp.float32)
    # Hyperedge features: B^{-1} * (H^T @ X').  bf16 x bf16 MXU, f32 acc; the
    # stored bf16 H^T is fed directly, only the small RHS is rounded to bf16.
    edge = jnp.dot(ht_ref[...], xw.astype(jnp.bfloat16),
                   preferred_element_type=jnp.float32)        # [Mp, Cp]
    edge = edge * binv_ref[...]
    # Back to nodes: D^{-1} * (H @ edge) + bias, fused ReLU.
    node = jnp.dot(h_ref[...], edge.astype(jnp.bfloat16),
                   preferred_element_type=jnp.float32)        # [Np, Cp]
    o_ref[...] = jnp.maximum(dinv_ref[...] * node + bias, 0.0)
    # TODO(synk): F.dropout in training mode (stochastic mask) not applied;
    # eval-mode dropout is the identity.


def _hgnn_pallas_call(Np, Mp, Cp, L, vmem_limit, single_buffer_constants):
    """Build the fused pallas_call; optionally single-buffer constant blocks."""
    if single_buffer_constants:
        def const(shape, imap):
            return pl.BlockSpec(shape, imap, pipeline_mode=pl.Buffered(1))
    else:
        const = pl.BlockSpec
    return pl.pallas_call(
        _hgnn_fused_kernel,
        out_shape=jax.ShapeDtypeStruct((Np, Cp), jnp.float32),
        grid=(L,),
        in_specs=[
            const((Np, Cp), lambda l: (0, 0)),               # x (layer-0 seed)
            const((Np, Mp), lambda l: (0, 0)),               # H   (resident)
            const((Mp, Np), lambda l: (0, 0)),               # H^T (resident)
            const((Np, 1), lambda l: (0, 0)),                # D^{-1}
            const((Mp, 1), lambda l: (0, 0)),                # B^{-1}
            pl.BlockSpec((1, Cp, Cp), lambda l: (l, 0, 0)),  # per-layer W
            pl.BlockSpec((1, 1, Cp), lambda l: (l, 0, 0)),   # per-layer bias
        ],
        out_specs=pl.BlockSpec((Np, Cp), lambda l: (0, 0)),  # resident carry
        compiler_params=pltpu.CompilerParams(
            dimension_semantics=("arbitrary",),   # layers are sequential
            vmem_limit_bytes=vmem_limit,
        ),
    )


def hgnn_conv_forward(params, x, hyperedge_index, hyperedge_weight,
                      hyperedge_attr, batch, num_edges):
    # hyperedge_attr / batch only feed the attention branch (attention=False).
    del hyperedge_attr, batch
    N, Cin = x.shape
    M = int(num_edges)
    Cout = params[0][0].shape[1]
    L = len(params)

    # Pad lane (last) dims to multiples of 128 -> lane-dense vregs, unmasked
    # stores, full-width MXU passes.
    # TODO(synk): when channel width exceeds 128, round Cp to 256 on v6e/v7x
    # (256-lane MXU); 128 already saturates v5e's MXU.
    Np = _round_up(N, 128)      # N is the lane dim of H^T
    Mp = _round_up(M, 128)      # M is the lane dim of H
    Cp = _round_up(max(Cin, Cout), 128)

    # Densify the sparse incidence list once (scatter-add multiplicities).
    # Stored as bf16 (exact for incidence counts <= 256) and fed straight to
    # the MXU's native bf16 path.
    # TODO(synk): on v7x, fp8(e4m3) storage would halve residency again and
    # use the native fp8 MXU path (verify mixed-dtype lowering first).
    H_f32 = jnp.zeros((Np, Mp), jnp.float32).at[
        hyperedge_index[0], hyperedge_index[1]].add(1.0)
    H_bf16 = H_f32.astype(jnp.bfloat16)
    HT_bf16 = H_bf16.T          # precomputed transpose: no in-kernel transpose
    # TODO(synk): on v7x (64 MiB VMEM), drop the resident H^T and express the
    # edge matmul as lax.dot_general(H, xw, contracting dims ((0,),(0,))) if
    # pl.lower_as_mlir confirms a single MXU pass without an XLU transpose.

    # Degree normalizers are O(N+M): compute once in XLA, not in-kernel.
    ew = jnp.zeros((Mp,), jnp.float32).at[:M].set(
        hyperedge_weight.astype(jnp.float32))
    deg_n = H_f32 @ ew                                    # [Np]
    deg_e = jnp.sum(H_f32, axis=0)                        # [Mp]
    d_inv = jnp.where(deg_n > 0.0,
                      1.0 / jnp.where(deg_n > 0.0, deg_n, 1.0),
                      0.0).reshape(Np, 1)
    b_inv = jnp.where(deg_e > 0.0,
                      1.0 / jnp.where(deg_e > 0.0, deg_e, 1.0),
                      0.0).reshape(Mp, 1)

    x_p = jnp.zeros((Np, Cp), jnp.float32).at[:N, :Cin].set(
        x.astype(jnp.float32))

    # Stack per-layer weights / biases, zero-padded to [Cp, Cp] / [1, Cp].
    W_stack = jnp.zeros((L, Cp, Cp), jnp.float32)
    b_stack = jnp.zeros((L, 1, Cp), jnp.float32)
    for i, (W, b) in enumerate(params):
        ci, co = W.shape
        W_stack = W_stack.at[i, :ci, :co].set(W.astype(jnp.float32))
        b_stack = b_stack.at[i, 0, :co].set(b.astype(jnp.float32))

    # VMEM accounting: constant blocks single-buffered, W/bias double-buffered,
    # [*,1] vectors lane-padded to 128, plus in-kernel matmul temporaries.
    vmem_need = (
        Np * Cp * 4                          # x (single buffer)
        + Np * Mp * 2 + Mp * Np * 2          # H / H^T, bf16 (single buffer)
        + (Np + Mp) * 128 * 4                # D^-1 / B^-1 (lane-padded)
        + 2 * (Cp * Cp * 4 + 8 * Cp * 4)     # W / bias (double buffered)
        + 2 * Np * Cp * 4                    # carried output block
        + 2 * (Np * Cp + Mp * Cp) * 4        # f32 temporaries (xw/edge/node)
        + (Np * Cp + Mp * Cp) * 2            # bf16 copies of xw / edge
    )
    try:
        vmem_cap = int(getattr(pltpu.get_tpu_info(), "vmem_capacity_bytes",
                               128 << 20))
    except Exception:
        vmem_cap = 128 << 20
    vmem_budget = (vmem_cap * 17) // 20      # ~85%: compiler-scratch headroom
    vmem_limit = int(min(vmem_budget,
                         max(16 << 20, vmem_need + vmem_need // 4 + (2 << 20))))

    args = (x_p, H_bf16, HT_bf16, d_inv, b_inv, W_stack, b_stack)
    try:
        out = _hgnn_pallas_call(Np, Mp, Cp, L, vmem_limit, True)(*args)
    except Exception:
        # Fallback if this JAX build rejects single-buffered block specs.
        out = _hgnn_pallas_call(Np, Mp, Cp, L, vmem_limit, False)(*args)

    # TODO(synk): for graphs where the padded [N,M] incidence no longer fits
    # the single-block path, switch to the two-phase tiled grid (edge-reduce
    # over node tiles, then per-node-tile scatter) with the node-tile axis
    # marked "parallel" so v7x's two TensorCores split it.
    return out[:N, :Cout]


def _reference(params, x, hyperedge_index, hyperedge_weight, num_edges):
    # Pure-JAX reference mirroring the kernel's bf16-matmul path (H stored in
    # bf16, xw/edge rounded to bf16, f32 accumulation).
    N = x.shape[0]
    H = jnp.zeros((N, num_edges), jnp.float32).at[
        hyperedge_index[0], hyperedge_index[1]].add(1.0)
    Hb = H.astype(jnp.bfloat16)
    w = hyperedge_weight.astype(jnp.float32)
    deg_n = H @ w
    d_inv = jnp.where(deg_n > 0, 1.0 / jnp.where(deg_n > 0, deg_n, 1.0), 0.0)
    deg_e = H.sum(axis=0)
    b_inv = jnp.where(deg_e > 0, 1.0 / jnp.where(deg_e > 0, deg_e, 1.0), 0.0)
    h = x.astype(jnp.float32)
    for W, b in params:
        xw = h @ W
        edge = b_inv[:, None] * jnp.dot(Hb.T, xw.astype(jnp.bfloat16),
                                        preferred_element_type=jnp.float32)
        out = d_inv[:, None] * jnp.dot(Hb, edge.astype(jnp.bfloat16),
                                       preferred_element_type=jnp.float32)
        h = jnp.maximum(out + b[None, :], 0.0)
    return h


if __name__ == "__main__":
    key = jax.random.PRNGKey(0)
    N, M, E = 16, 8, 40          # nodes, hyperedges, incidences
    Cin, Cout = 4, 8             # in_channels, out_channels
    dropout = 0.5                # identity in eval mode

    k = jax.random.split(key, 10)
    x = jax.random.normal(k[0], (N, Cin), jnp.float32)
    node_idx = jax.random.randint(k[1], (E,), 0, N)
    edge_idx = jax.random.randint(k[2], (E,), 0, M)
    hyperedge_index = jnp.stack([node_idx, edge_idx]).astype(jnp.int32)
    hyperedge_weight = jax.random.uniform(k[3], (M,), jnp.float32, 0.5, 1.5)
    hyperedge_attr = jax.random.normal(k[4], (M, Cin), jnp.float32)  # unused
    batch = jnp.zeros((N,), jnp.int32)                               # unused

    def glorot(kk, shape):
        lim = (6.0 / (shape[0] + shape[1])) ** 0.5
        return jax.random.uniform(kk, shape, jnp.float32, -lim, lim)

    params = [
        (glorot(k[5], (Cin, Cout)), jnp.zeros((Cout,), jnp.float32)),   # conv1
        (glorot(k[6], (Cout, Cout)), jnp.zeros((Cout,), jnp.float32)),  # conv2
        (glorot(k[7], (Cout, Cout)), jnp.zeros((Cout,), jnp.float32)),  # conv3
    ]

    out = hgnn_conv_forward(params, x, hyperedge_index, hyperedge_weight,
                            hyperedge_attr, batch, M)
    out = jax.block_until_ready(out)

    ref = _reference(params, x, hyperedge_index, hyperedge_weight, M)
    assert out.shape == (N, Cout)
    # bf16-rounded matmul path: compare against the bf16-mirroring reference
    # with a tolerance that covers MXU vs XLA accumulation-order differences.
    assert jnp.allclose(out, ref, atol=1e-2, rtol=1e-2), "mismatch vs reference"

    print("KERNEL_OK")
</pallas_src>

<mosaic_0001>
module attributes {stable_mosaic.version = 11 : i64} {
  func.func @_hgnn_fused_kernel(%arg0: i32, %arg1: memref<128x128xf32, #tpu.memory_space<vmem>>, %arg2: memref<128x128xbf16, #tpu.memory_space<vmem>>, %arg3: memref<128x128xbf16, #tpu.memory_space<vmem>>, %arg4: memref<128x1xf32, #tpu.memory_space<vmem>>, %arg5: memref<128x1xf32, #tpu.memory_space<vmem>>, %arg6: memref<1x128x128xf32, #tpu.memory_space<vmem>>, %arg7: memref<1x1x128xf32, #tpu.memory_space<vmem>>, %arg8: memref<128x128xf32, #tpu.memory_space<vmem>>) attributes {dimension_semantics = [#tpu.dimension_semantics<arbitrary>], iteration_bounds = array<i64: 3>, scalar_prefetch = 0 : i64, scratch_operands = 0 : i64, tpu.core_type = #tpu.core_type<tc>, window_params = [{pipeline_mode = #tpu.pipeline_mode<synchronous>, transform_indices = @transform_0, window_bounds = array<i64: 128, 128>}, {pipeline_mode = #tpu.pipeline_mode<synchronous>, transform_indices = @transform_1, window_bounds = array<i64: 128, 128>}, {pipeline_mode = #tpu.pipeline_mode<synchronous>, transform_indices = @transform_2, window_bounds = array<i64: 128, 128>}, {pipeline_mode = #tpu.pipeline_mode<synchronous>, transform_indices = @transform_3, window_bounds = array<i64: 128, 1>}, {pipeline_mode = #tpu.pipeline_mode<synchronous>, transform_indices = @transform_4, window_bounds = array<i64: 128, 1>}, {transform_indices = @transform_5, window_bounds = array<i64: 1, 128, 128>}, {transform_indices = @transform_6, window_bounds = array<i64: 1, 1, 128>}, {pipeline_mode = #tpu.pipeline_mode<synchronous>, transform_indices = @transform_7, window_bounds = array<i64: 128, 128>}]} {
    %c0_i32 = arith.constant 0 : i32
    %0 = arith.cmpi eq, %arg0, %c0_i32 : i32
    %1 = arith.extui %0 : i1 to i32
    %c0_i32_0 = arith.constant 0 : i32
    %2 = arith.cmpi ne, %1, %c0_i32_0 : i32
    scf.if %2 {
      %c0_21 = arith.constant 0 : index
      %c0_22 = arith.constant 0 : index
      %26 = vector.load %arg1[%c0_21, %c0_22] : memref<128x128xf32, #tpu.memory_space<vmem>>, vector<128x128xf32>
      %c0_23 = arith.constant 0 : index
      %c0_24 = arith.constant 0 : index
      %27 = vector.load %arg8[%c0_23, %c0_24] : memref<128x128xf32, #tpu.memory_space<vmem>>, vector<128x128xf32>
      tpu.vector_store %arg8[%c0_23, %c0_24], %26 {strides = array<i32>} : memref<128x128xf32, #tpu.memory_space<vmem>>, vector<128x128xf32>,
    } else {
    }
    %c0 = arith.constant 0 : index
    %c0_1 = arith.constant 0 : index
    %3 = vector.load %arg8[%c0, %c0_1] : memref<128x128xf32, #tpu.memory_space<vmem>>, vector<128x128xf32>
    %c0_2 = arith.constant 0 : index
    %c0_3 = arith.constant 0 : index
    %c0_4 = arith.constant 0 : index
    %4 = vector.load %arg6[%c0_2, %c0_3, %c0_4] : memref<1x128x128xf32, #tpu.memory_space<vmem>>, vector<1x128x128xf32>
    %5 = vector.shape_cast %4 : vector<1x128x128xf32> to vector<128x128xf32>
    %c0_5 = arith.constant 0 : index
    %c0_6 = arith.constant 0 : index
    %c0_7 = arith.constant 0 : index
    %6 = vector.load %arg7[%c0_5, %c0_6, %c0_7] : memref<1x1x128xf32, #tpu.memory_space<vmem>>, vector<1x1x128xf32>
    %7 = vector.shape_cast %6 : vector<1x1x128xf32> to vector<1x128xf32>
    %cst = arith.constant dense<0.000000e+00> : vector<128x128xf32>
    %8 = tpu.matmul %3, %5, %cst {dimension_numbers = #tpu.dot_dimension_numbers<[1], [0], [0], [1], [0, 0, 1, 1], [], []>} : vector<128x128xf32>, vector<128x128xf32>, vector<128x128xf32> -> vector<128x128xf32>
    %c0_8 = arith.constant 0 : index
    %c0_9 = arith.constant 0 : index
    %9 = vector.load %arg3[%c0_8, %c0_9] : memref<128x128xbf16, #tpu.memory_space<vmem>>, vector<128x128xbf16>
    %10 = arith.truncf %8 : vector<128x128xf32> to vector<128x128xbf16>
    %cst_10 = arith.constant dense<0.000000e+00> : vector<128x128xf32>
    %11 = tpu.matmul %9, %10, %cst_10 {dimension_numbers = #tpu.dot_dimension_numbers<[1], [0], [0], [1], [0, 0, 1, 1], [], []>} : vector<128x128xbf16>, vector<128x128xbf16>, vector<128x128xf32> -> vector<128x128xf32>
    %c0_11 = arith.constant 0 : index
    %c0_12 = arith.constant 0 : index
    %12 = vector.load %arg5[%c0_11, %c0_12] : memref<128x1xf32, #tpu.memory_space<vmem>>, vector<128x1xf32>
    %13 = vector.broadcast %12 : vector<128x1xf32> to vector<128x128xf32>
    %14 = arith.mulf %11, %13 : vector<128x128xf32>
    %c0_13 = arith.constant 0 : index
    %c0_14 = arith.constant 0 : index
    %15 = vector.load %arg2[%c0_13, %c0_14] : memref<128x128xbf16, #tpu.memory_space<vmem>>, vector<128x128xbf16>
    %16 = arith.truncf %14 : vector<128x128xf32> to vector<128x128xbf16>
    %cst_15 = arith.constant dense<0.000000e+00> : vector<128x128xf32>
    %17 = tpu.matmul %15, %16, %cst_15 {dimension_numbers = #tpu.dot_dimension_numbers<[1], [0], [0], [1], [0, 0, 1, 1], [], []>} : vector<128x128xbf16>, vector<128x128xbf16>, vector<128x128xf32> -> vector<128x128xf32>
    %c0_16 = arith.constant 0 : index
    %c0_17 = arith.constant 0 : index
    %18 = vector.load %arg4[%c0_16, %c0_17] : memref<128x1xf32, #tpu.memory_space<vmem>>, vector<128x1xf32>
    %19 = vector.broadcast %18 : vector<128x1xf32> to vector<128x128xf32>
    %20 = arith.mulf %19, %17 : vector<128x128xf32>
    %21 = vector.broadcast %7 : vector<1x128xf32> to vector<128x128xf32>
    %22 = arith.addf %20, %21 : vector<128x128xf32>
    %cst_18 = arith.constant 0.000000e+00 : f32
    %23 = vector.broadcast %cst_18 : f32 to vector<128x128xf32>
    %24 = arith.maximumf %22, %23 : vector<128x128xf32>
    %c0_19 = arith.constant 0 : index
    %c0_20 = arith.constant 0 : index
    %25 = vector.load %arg8[%c0_19, %c0_20] : memref<128x128xf32, #tpu.memory_space<vmem>>, vector<128x128xf32>
    tpu.vector_store %arg8[%c0_19, %c0_20], %24 {strides = array<i32>} : memref<128x128xf32, #tpu.memory_space<vmem>>, vector<128x128xf32>,
    return
  }
  func.func @transform_0(%arg0: i32) -> (i32, i32) {
    %c0_i32 = arith.constant 0 : i32
    %c0_i32_0 = arith.constant 0 : i32
    %c0_i32_1 = arith.constant 0 : i32
    return %c0_i32, %c0_i32_0 : i32, i32
  }
  func.func @transform_1(%arg0: i32) -> (i32, i32) {
    %c0_i32 = arith.constant 0 : i32
    %c0_i32_0 = arith.constant 0 : i32
    %c0_i32_1 = arith.constant 0 : i32
    return %c0_i32, %c0_i32_0 : i32, i32
  }
  func.func @transform_2(%arg0: i32) -> (i32, i32) {
    %c0_i32 = arith.constant 0 : i32
    %c0_i32_0 = arith.constant 0 : i32
    %c0_i32_1 = arith.constant 0 : i32
    return %c0_i32, %c0_i32_0 : i32, i32
  }
  func.func @transform_3(%arg0: i32) -> (i32, i32) {
    %c0_i32 = arith.constant 0 : i32
    %c0_i32_0 = arith.constant 0 : i32
    %c0_i32_1 = arith.constant 0 : i32
    return %c0_i32, %c0_i32_0 : i32, i32
  }
  func.func @transform_4(%arg0: i32) -> (i32, i32) {
    %c0_i32 = arith.constant 0 : i32
    %c0_i32_0 = arith.constant 0 : i32
    %c0_i32_1 = arith.constant 0 : i32
    return %c0_i32, %c0_i32_0 : i32, i32
  }
  func.func @transform_5(%arg0: i32) -> (i32, i32, i32) {
    %c0_i32 = arith.constant 0 : i32
    %c0_i32_0 = arith.constant 0 : i32
    %c0_i32_1 = arith.constant 0 : i32
    return %arg0, %c0_i32, %c0_i32_0 : i32, i32, i32
  }
  func.func @transform_6(%arg0: i32) -> (i32, i32, i32) {
    %c0_i32 = arith.constant 0 : i32
    %c0_i32_0 = arith.constant 0 : i32
    %c0_i32_1 = arith.constant 0 : i32
    return %arg0, %c0_i32, %c0_i32_0 : i32, i32, i32
  }
  func.func @transform_7(%arg0: i32) -> (i32, i32) {
    %c0_i32 = arith.constant 0 : i32
    %c0_i32_0 = arith.constant 0 : i32
    %c0_i32_1 = arith.constant 0 : i32
    return %c0_i32, %c0_i32_0 : i32, i32
  }
}

module attributes {stable_mosaic.version = 11 : i64} {
  func.func @_hgnn_fused_kernel(%arg0: i32, %arg1: memref<128x128xf32, #tpu.memory_space<vmem>>, %arg2: memref<128x128xbf16, #tpu.memory_space<vmem>>, %arg3: memref<128x128xbf16, #tpu.memory_space<vmem>>, %arg4: memref<128x1xf32, #tpu.memory_space<vmem>>, %arg5: memref<128x1xf32, #tpu.memory_space<vmem>>, %arg6: memref<1x128x128xf32, #tpu.memory_space<vmem>>, %arg7: memref<1x1x128xf32, #tpu.memory_space<vmem>>, %arg8: memref<128x128xf32, #tpu.memory_space<vmem>>) attributes {dimension_semantics = [#tpu.dimension_semantics<arbitrary>], iteration_bounds = array<i64: 3>, scalar_prefetch = 0 : i64, scratch_operands = 0 : i64, tpu.core_type = #tpu.core_type<tc>, window_params = [{pipeline_mode = #tpu.pipeline_mode<synchronous>, transform_indices = @transform_0, window_bounds = array<i64: 128, 128>}, {pipeline_mode = #tpu.pipeline_mode<synchronous>, transform_indices = @transform_1, window_bounds = array<i64: 128, 128>}, {pipeline_mode = #tpu.pipeline_mode<synchronous>, transform_indices = @transform_2, window_bounds = array<i64: 128, 128>}, {pipeline_mode = #tpu.pipeline_mode<synchronous>, transform_indices = @transform_3, window_bounds = array<i64: 128, 1>}, {pipeline_mode = #tpu.pipeline_mode<synchronous>, transform_indices = @transform_4, window_bounds = array<i64: 128, 1>}, {transform_indices = @transform_5, window_bounds = array<i64: 1, 128, 128>}, {transform_indices = @transform_6, window_bounds = array<i64: 1, 1, 128>}, {pipeline_mode = #tpu.pipeline_mode<synchronous>, transform_indices = @transform_7, window_bounds = array<i64: 128, 128>}]} {
    %c0_i32 = arith.constant 0 : i32
    %0 = arith.cmpi eq, %arg0, %c0_i32 : i32
    %1 = arith.extui %0 : i1 to i32
    %c0_i32_0 = arith.constant 0 : i32
    %2 = arith.cmpi ne, %1, %c0_i32_0 : i32
    scf.if %2 {
      %c0_21 = arith.constant 0 : index
      %c0_22 = arith.constant 0 : index
      %26 = vector.load %arg1[%c0_21, %c0_22] : memref<128x128xf32, #tpu.memory_space<vmem>>, vector<128x128xf32>
      %c0_23 = arith.constant 0 : index
      %c0_24 = arith.constant 0 : index
      %27 = vector.load %arg8[%c0_23, %c0_24] : memref<128x128xf32, #tpu.memory_space<vmem>>, vector<128x128xf32>
      tpu.vector_store %arg8[%c0_23, %c0_24], %26 {strides = array<i32>} : memref<128x128xf32, #tpu.memory_space<vmem>>, vector<128x128xf32>,
    } else {
    }
    %c0 = arith.constant 0 : index
    %c0_1 = arith.constant 0 : index
    %3 = vector.load %arg8[%c0, %c0_1] : memref<128x128xf32, #tpu.memory_space<vmem>>, vector<128x128xf32>
    %c0_2 = arith.constant 0 : index
    %c0_3 = arith.constant 0 : index
    %c0_4 = arith.constant 0 : index
    %4 = vector.load %arg6[%c0_2, %c0_3, %c0_4] : memref<1x128x128xf32, #tpu.memory_space<vmem>>, vector<1x128x128xf32>
    %5 = vector.shape_cast %4 : vector<1x128x128xf32> to vector<128x128xf32>
    %c0_5 = arith.constant 0 : index
    %c0_6 = arith.constant 0 : index
    %c0_7 = arith.constant 0 : index
    %6 = vector.load %arg7[%c0_5, %c0_6, %c0_7] : memref<1x1x128xf32, #tpu.memory_space<vmem>>, vector<1x1x128xf32>
    %7 = vector.shape_cast %6 : vector<1x1x128xf32> to vector<1x128xf32>
    %cst = arith.constant dense<0.000000e+00> : vector<128x128xf32>
    %8 = tpu.matmul %3, %5, %cst {dimension_numbers = #tpu.dot_dimension_numbers<[1], [0], [0], [1], [0, 0, 1, 1], [], []>} : vector<128x128xf32>, vector<128x128xf32>, vector<128x128xf32> -> vector<128x128xf32>
    %c0_8 = arith.constant 0 : index
    %c0_9 = arith.constant 0 : index
    %9 = vector.load %arg3[%c0_8, %c0_9] : memref<128x128xbf16, #tpu.memory_space<vmem>>, vector<128x128xbf16>
    %10 = arith.truncf %8 : vector<128x128xf32> to vector<128x128xbf16>
    %cst_10 = arith.constant dense<0.000000e+00> : vector<128x128xf32>
    %11 = tpu.matmul %9, %10, %cst_10 {dimension_numbers = #tpu.dot_dimension_numbers<[1], [0], [0], [1], [0, 0, 1, 1], [], []>} : vector<128x128xbf16>, vector<128x128xbf16>, vector<128x128xf32> -> vector<128x128xf32>
    %c0_11 = arith.constant 0 : index
    %c0_12 = arith.constant 0 : index
    %12 = vector.load %arg5[%c0_11, %c0_12] : memref<128x1xf32, #tpu.memory_space<vmem>>, vector<128x1xf32>
    %13 = vector.broadcast %12 : vector<128x1xf32> to vector<128x128xf32>
    %14 = arith.mulf %11, %13 : vector<128x128xf32>
    %c0_13 = arith.constant 0 : index
    %c0_14 = arith.constant 0 : index
    %15 = vector.load %arg2[%c0_13, %c0_14] : memref<128x128xbf16, #tpu.memory_space<vmem>>, vector<128x128xbf16>
    %16 = arith.truncf %14 : vector<128x128xf32> to vector<128x128xbf16>
    %cst_15 = arith.constant dense<0.000000e+00> : vector<128x128xf32>
    %17 = tpu.matmul %15, %16, %cst_15 {dimension_numbers = #tpu.dot_dimension_numbers<[1], [0], [0], [1], [0, 0, 1, 1], [], []>} : vector<128x128xbf16>, vector<128x128xbf16>, vector<128x128xf32> -> vector<128x128xf32>
    %c0_16 = arith.constant 0 : index
    %c0_17 = arith.constant 0 : index
    %18 = vector.load %arg4[%c0_16, %c0_17] : memref<128x1xf32, #tpu.memory_space<vmem>>, vector<128x1xf32>
    %19 = vector.broadcast %18 : vector<128x1xf32> to vector<128x128xf32>
    %20 = arith.mulf %19, %17 : vector<128x128xf32>
    %21 = vector.broadcast %7 : vector<1x128xf32> to vector<128x128xf32>
    %22 = arith.addf %20, %21 : vector<128x128xf32>
    %cst_18 = arith.constant 0.000000e+00 : f32
    %23 = vector.broadcast %cst_18 : f32 to vector<128x128xf32>
    %24 = arith.maximumf %22, %23 : vector<128x128xf32>
    %c0_19 = arith.constant 0 : index
    %c0_20 = arith.constant 0 : index
    %25 = vector.load %arg8[%c0_19, %c0_20] : memref<128x128xf32, #tpu.memory_space<vmem>>, vector<128x128xf32>
    tpu.vector_store %arg8[%c0_19, %c0_20], %24 {strides = array<i32>} : memref<128x128xf32, #tpu.memory_space<vmem>>, vector<128x128xf32>,
    return
  }
  func.func @transform_0(%arg0: i32) -> (i32, i32) {
    %c0_i32 = arith.constant 0 : i32
    %c0_i32_0 = arith.constant 0 : i32
    %c0_i32_1 = arith.constant 0 : i32
    return %c0_i32, %c0_i32_0 : i32, i32
  }
  func.func @transform_1(%arg0: i32) -> (i32, i32) {
    %c0_i32 = arith.constant 0 : i32
    %c0_i32_0 = arith.constant 0 : i32
    %c0_i32_1 = arith.constant 0 : i32
    return %c0_i32, %c0_i32_0 : i32, i32
  }
  func.func @transform_2(%arg0: i32) -> (i32, i32) {
    %c0_i32 = arith.constant 0 : i32
    %c0_i32_0 = arith.constant 0 : i32
    %c0_i32_1 = arith.constant 0 : i32
    return %c0_i32, %c0_i32_0 : i32, i32
  }
  func.func @transform_3(%arg0: i32) -> (i32, i32) {
    %c0_i32 = arith.constant 0 : i32
    %c0_i32_0 = arith.constant 0 : i32
    %c0_i32_1 = arith.constant 0 : i32
    return %c0_i32, %c0_i32_0 : i32, i32
  }
  func.func @transform_4(%arg0: i32) -> (i32, i32) {
    %c0_i32 = arith.constant 0 : i32
    %c0_i32_0 = arith.constant 0 : i32
    %c0_i32_1 = arith.constant 0 : i32
    return %c0_i32, %c0_i32_0 : i32, i32
  }
  func.func @transform_5(%arg0: i32) -> (i32, i32, i32) {
    %c0_i32 = arith.constant 0 : i32
    %c0_i32_0 = arith.constant 0 : i32
    %c0_i32_1 = arith.constant 0 : i32
    return %arg0, %c0_i32, %c0_i32_0 : i32, i32, i32
  }
  func.func @transform_6(%arg0: i32) -> (i32, i32, i32) {
    %c0_i32 = arith.constant 0 : i32
    %c0_i32_0 = arith.constant 0 : i32
    %c0_i32_1 = arith.constant 0 : i32
    return %arg0, %c0_i32, %c0_i32_0 : i32, i32, i32
  }
  func.func @transform_7(%arg0: i32) -> (i32, i32) {
    %c0_i32 = arith.constant 0 : i32
    %c0_i32_0 = arith.constant 0 : i32
    %c0_i32_1 = arith.constant 0 : i32
    return %c0_i32, %c0_i32_0 : i32, i32
  }
}

</mosaic_0001>

<llo_original>
// kernel: tpu_custom_call.1
$region0: #{tpu_custom_call.1}
  #allocation0 [shape = 'u32[]', space=smem, size = 0x4, offset = 0x4, fixed_abs, tag = 'smem constant byte address 0x4 - core index']
  #allocation1 [shape = 'u32[72,128]{1,0:T(1,128)}', space=vmem, size = 0x9000, scoped, tag = 'internal scratch']
  %s0 = inlined_call_operand.vmem [shape: f32[128,128], index: 0, kind: input, shape index: {}]
  %s1 = inlined_call_operand.vmem [shape: bf16[128,128], index: 1, kind: input, shape index: {}]
  %s2 = inlined_call_operand.vmem [shape: bf16[128,128], index: 2, kind: input, shape index: {}]
  %s3 = inlined_call_operand.vmem [shape: f32[128,1], index: 3, kind: input, shape index: {}]
  %s4 = inlined_call_operand.vmem [shape: f32[128,1], index: 4, kind: input, shape index: {}]
  %s5 = inlined_call_operand.hbm [shape: f32[3,128,128], index: 5, kind: input, shape index: {}]
  %s6 = inlined_call_operand.vmem [shape: f32[3,1,128], index: 6, kind: input, shape index: {}]
  %s7 = inlined_call_operand.hbm [shape: f32[128,128], index: 7, kind: output, shape index: {}]
  %s8 = sld [smem:[#allocation0]]
  $region69: #{tpu_custom_call.1} parent=0
    _
  %s10 = ssub.s32 1, %s8
  %s11 = scalar_select 0, %s10, %s8
  $region1: #{tpu_custom_call.1} parent=0
    #allocation2 [shape = 'u8[131072]{0}', space=vmem, size = 0x20000, scoped, tag = 'input window, operand 5']
    #allocation3 [shape = 's32[2]{0}', space=sflag, size = 0x8, scoped, tag = 'scoped memory for tpu_custom_call.1']
    #allocation4 [shape = 's32[2]{0}', space=sflag, size = 0x8, scoped, tag = 'scoped memory for tpu_custom_call.1']
    #allocation5 [shape = 'u8[65536]{0}', space=vmem, size = 0x10000, scoped, tag = 'output window, operand 0, single buffered']
    %12 = vsyncpa [#allocation3], 0
    %s13 = scalar_lea.sflag [#allocation3], 1
    %14 = vsyncpa %s13, 0
    %15 = vsyncpa [#allocation4], 0
    loop: start=0, step=1, limit=5
    $region2: #{tpu_custom_call.1} parent=1 // loop_pre_header
      _
    $region3: #{tpu_custom_call.1} parent=1 // loop_header
      %s17 = sphi 0, %s21
      %p18 = scmp.ge.s32.totalorder %s17, 5
      %s25 = sphi 0, %s25
      %s27 = sphi 0, %s25
      %s28 = sphi 0, %s27
      %s42 = sphi 0, %s28
      %s46 = sphi 0, %s46
      %s48 = sphi 0, %s46
      %s49 = sphi 0, %s48
      %s63 = sphi 0, %s49
      %s67 = sphi 0, %s67
      %s69 = sphi 0, %s67
      %s70 = sphi 0, %s69
      %s84 = sphi 0, %s70
      %s88 = sphi 0, %s88
      %s90 = sphi 0, %s88
      %s91 = sphi 0, %s90
      %s105 = sphi 0, %s91
      %s109 = sphi 0, %s109
      %s111 = sphi 0, %s109
      %s112 = sphi 0, %s111
      %s126 = sphi 0, %s112
      %s132 = sphi 0, %s134
      %s135 = sphi 0, %s132
      %s136 = sphi 0, %s135
      %s152 = sphi 0, %s136
      %s158 = sphi 0, %s160
      %s161 = sphi 0, %s158
      %s162 = sphi 0, %s161
      %s178 = sphi 0, %s162
      %s182 = sphi 0, %s182
      %s184 = sphi 0, %s182
      %s185 = sphi 0, %s184
      %s199 = sphi 0, %s185
    $region4: #{tpu_custom_call.1} parent=1 // loop_header_branch
      %20 = sbr.rel (%p18) target = $region8
    $region5: #{tpu_custom_call.1} parent=1 // loop_body
      %s22 = ssub.s32 %s17, 1
      %s23 = ssub.s32 %s17, 2
      %s24 = sadd.s32 %s17, 1
      %s26 = sadd.s32 %s25, 1
      %p29 = scmp.eq.s32.totalorder %s17, 2
      %p30 = scmp.ne.s32.totalorder %s25, %s27
      %p31 = scmp.eq.s32.totalorder %s17, 0
      %p32 = por %p30, %p31
      %p33 = scmp.ne.s32.totalorder %s25, %s27
      %p34 = scmp.eq.s32.totalorder %s22, 2
      %p35 = por %p33, %p34
      %p36 = scmp.ne.s32.totalorder %s27, %s28
      %p37 = scmp.eq.s32.totalorder %s22, 0
      %p38 = por %p36, %p37
      %p39 = scmp.ne.s32.totalorder %s27, %s28
      %p40 = scmp.eq.s32.totalorder %s23, 2
      %p41 = por %p39, %p40
      %p43 = scmp.ne.s32.totalorder %s28, %s42
      %p44 = scmp.eq.s32.totalorder %s23, 0
      %p45 = por %p43, %p44
      %s47 = sadd.s32 %s46, 1
      %p50 = scmp.eq.s32.totalorder %s17, 2
      %p51 = scmp.ne.s32.totalorder %s46, %s48
      %p52 = scmp.eq.s32.totalorder %s17, 0
      %p53 = por %p51, %p52
      %p54 = scmp.ne.s32.totalorder %s46, %s48
      %p55 = scmp.eq.s32.totalorder %s22, 2
      %p56 = por %p54, %p55
      %p57 = scmp.ne.s32.totalorder %s48, %s49
      %p58 = scmp.eq.s32.totalorder %s22, 0
      %p59 = por %p57, %p58
      %p60 = scmp.ne.s32.totalorder %s48, %s49
      %p61 = scmp.eq.s32.totalorder %s23, 2
      %p62 = por %p60, %p61
      %p64 = scmp.ne.s32.totalorder %s49, %s63
      %p65 = scmp.eq.s32.totalorder %s23, 0
      %p66 = por %p64, %p65
      %s68 = sadd.s32 %s67, 1
      %p71 = scmp.eq.s32.totalorder %s17, 2
      %p72 = scmp.ne.s32.totalorder %s67, %s69
      %p73 = scmp.eq.s32.totalorder %s17, 0
      %p74 = por %p72, %p73
      %p75 = scmp.ne.s32.totalorder %s67, %s69
      %p76 = scmp.eq.s32.totalorder %s22, 2
      %p77 = por %p75, %p76
      %p78 = scmp.ne.s32.totalorder %s69, %s70
      %p79 = scmp.eq.s32.totalorder %s22, 0
      %p80 = por %p78, %p79
      %p81 = scmp.ne.s32.totalorder %s69, %s70
      %p82 = scmp.eq.s32.totalorder %s23, 2
      %p83 = por %p81, %p82
      %p85 = scmp.ne.s32.totalorder %s70, %s84
      %p86 = scmp.eq.s32.totalorder %s23, 0
      %p87 = por %p85, %p86
      %s89 = sadd.s32 %s88, 1
      %p92 = scmp.eq.s32.totalorder %s17, 2
      %p93 = scmp.ne.s32.totalorder %s88, %s90
      %p94 = scmp.eq.s32.totalorder %s17, 0
      %p95 = por %p93, %p94
      %p96 = scmp.ne.s32.totalorder %s88, %s90
      %p97 = scmp.eq.s32.totalorder %s22, 2
      %p98 = por %p96, %p97
      %p99 = scmp.ne.s32.totalorder %s90, %s91
      %p100 = scmp.eq.s32.totalorder %s22, 0
      %p101 = por %p99, %p100
      %p102 = scmp.ne.s32.totalorder %s90, %s91
      %p103 = scmp.eq.s32.totalorder %s23, 2
      %p104 = por %p102, %p103
      %p106 = scmp.ne.s32.totalorder %s91, %s105
      %p107 = scmp.eq.s32.totalorder %s23, 0
      %p108 = por %p106, %p107
      %s110 = sadd.s32 %s109, 1
      %p113 = scmp.eq.s32.totalorder %s17, 2
      %p114 = scmp.ne.s32.totalorder %s109, %s111
      %p115 = scmp.eq.s32.totalorder %s17, 0
      %p116 = por %p114, %p115
      %p117 = scmp.ne.s32.totalorder %s109, %s111
      %p118 = scmp.eq.s32.totalorder %s22, 2
      %p119 = por %p117, %p118
      %p120 = scmp.ne.s32.totalorder %s111, %s112
      %p121 = scmp.eq.s32.totalorder %s22, 0
      %p122 = por %p120, %p121
      %p123 = scmp.ne.s32.totalorder %s111, %s112
      %p124 = scmp.eq.s32.totalorder %s23, 2
      %p125 = por %p123, %p124
      %p127 = scmp.ne.s32.totalorder %s112, %s126
      %p128 = scmp.eq.s32.totalorder %s23, 0
      %p129 = por %p127, %p128
      %s130 = ssub.s32 %s17, %s24
      %p131 = scmp.eq.s32.totalorder %s130, 0
      %s133 = sadd.s32 %s132, 1
      %s134 = scalar_select %p131, %s132, %s133
      %p137 = pneg %p131
      %p138 = scmp.eq.s32.totalorder %s17, 2
      %p139 = por %p137, %p138
      %p140 = scmp.ne.s32.totalorder %s132, %s135
      %p141 = scmp.eq.s32.totalorder %s17, 0
      %p142 = por %p140, %p141
      %p143 = scmp.ne.s32.totalorder %s132, %s135
      %p144 = scmp.eq.s32.totalorder %s22, 2
      %p145 = por %p143, %p144
      %p146 = scmp.ne.s32.totalorder %s135, %s136
      %p147 = scmp.eq.s32.totalorder %s22, 0
      %p148 = por %p146, %p147
      %p149 = scmp.ne.s32.totalorder %s135, %s136
      %p150 = scmp.eq.s32.totalorder %s23, 2
      %p151 = por %p149, %p150
      %p153 = scmp.ne.s32.totalorder %s136, %s152
      %p154 = scmp.eq.s32.totalorder %s23, 0
      %p155 = por %p153, %p154
      %s156 = ssub.s32 %s17, %s24
      %p157 = scmp.eq.s32.totalorder %s156, 0
      %s159 = sadd.s32 %s158, 1
      %s160 = scalar_select %p157, %s158, %s159
      %p163 = pneg %p157
      %p164 = scmp.eq.s32.totalorder %s17, 2
      %p165 = por %p163, %p164
      %p166 = scmp.ne.s32.totalorder %s158, %s161
      %p167 = scmp.eq.s32.totalorder %s17, 0
      %p168 = por %p166, %p167
      %p169 = scmp.ne.s32.totalorder %s158, %s161
      %p170 = scmp.eq.s32.totalorder %s22, 2
      %p171 = por %p169, %p170
      %p172 = scmp.ne.s32.totalorder %s161, %s162
      %p173 = scmp.eq.s32.totalorder %s22, 0
      %p174 = por %p172, %p173
      %p175 = scmp.ne.s32.totalorder %s161, %s162
      %p176 = scmp.eq.s32.totalorder %s23, 2
      %p177 = por %p175, %p176
      %p179 = scmp.ne.s32.totalorder %s162, %s178
      %p180 = scmp.eq.s32.totalorder %s23, 0
      %p181 = por %p179, %p180
      %s183 = sadd.s32 %s182, 1
      %p186 = scmp.eq.s32.totalorder %s17, 2
      %p187 = scmp.ne.s32.totalorder %s182, %s184
      %p188 = scmp.eq.s32.totalorder %s17, 0
      %p189 = por %p187, %p188
      %p190 = scmp.ne.s32.totalorder %s182, %s184
      %p191 = scmp.eq.s32.totalorder %s22, 2
      %p192 = por %p190, %p191
      %p193 = scmp.ne.s32.totalorder %s184, %s185
      %p194 = scmp.eq.s32.totalorder %s22, 0
      %p195 = por %p193, %p194
      %p196 = scmp.ne.s32.totalorder %s184, %s185
      %p197 = scmp.eq.s32.totalorder %s23, 2
      %p198 = por %p196, %p197
      %p200 = scmp.ne.s32.totalorder %s185, %s199
      %p201 = scmp.eq.s32.totalorder %s23, 0
      %p202 = por %p200, %p201
      %p203 = scmp.le.s32.totalorder 1, %s17
      %p204 = scmp.lt.s32.totalorder %s17, 4
      %p205 = pnand %p203, %p204
      %p206 = pneg %p205
      // Predicated region
      $region9: #{tpu_custom_call.1} parent=5 // pred_check
        _
      $region10: #{tpu_custom_call.1} parent=5 // pred_check_branch
        %208 = sbr.rel (%p205) target = $region12
      $region11: #{tpu_custom_call.1} parent=5 // pred_region
        %s209 = ssub.s32 %s17, 1
        // Predicated region
        $region13: #{tpu_custom_call.1} parent=11 // pred_check
          %p210 = pneg %p38
        $region14: #{tpu_custom_call.1} parent=11 // pred_check_branch
          %212 = sbr.rel (%p210) target = $region16
        $region15: #{tpu_custom_call.1} parent=11 // pred_region
          _
        $region16: #{tpu_custom_call.1} parent=11 // pred_fallthru
          _
        // Predicated region
        $region17: #{tpu_custom_call.1} parent=11 // pred_check
          %p213 = pneg %p59
        $region18: #{tpu_custom_call.1} parent=11 // pred_check_branch
          %215 = sbr.rel (%p213) target = $region20
        $region19: #{tpu_custom_call.1} parent=11 // pred_region
          _
        $region20: #{tpu_custom_call.1} parent=11 // pred_fallthru
          _
        // Predicated region
        $region21: #{tpu_custom_call.1} parent=11 // pred_check
          %p216 = pneg %p80
        $region22: #{tpu_custom_call.1} parent=11 // pred_check_branch
          %218 = sbr.rel (%p216) target = $region24
        $region23: #{tpu_custom_call.1} parent=11 // pred_region
          _
        $region24: #{tpu_custom_call.1} parent=11 // pred_fallthru
          _
        // Predicated region
        $region25: #{tpu_custom_call.1} parent=11 // pred_check
          %p219 = pneg %p101
        $region26: #{tpu_custom_call.1} parent=11 // pred_check_branch
          %221 = sbr.rel (%p219) target = $region28
        $region27: #{tpu_custom_call.1} parent=11 // pred_region
          _
        $region28: #{tpu_custom_call.1} parent=11 // pred_fallthru
          _
        // Predicated region
        $region29: #{tpu_custom_call.1} parent=11 // pred_check
          %p222 = pneg %p122
        $region30: #{tpu_custom_call.1} parent=11 // pred_check_branch
          %224 = sbr.rel (%p222) target = $region32
        $region31: #{tpu_custom_call.1} parent=11 // pred_region
          _
        $region32: #{tpu_custom_call.1} parent=11 // pred_fallthru
          _
      $region12: #{tpu_custom_call.1} parent=5 // pred_fallthru
        _
      %p225 = scmp.lt.s32.totalorder %s17, 3
      // Predicated region
      $region33: #{tpu_custom_call.1} parent=5 // pred_check
        %p226 = pneg %p225
      $region34: #{tpu_custom_call.1} parent=5 // pred_check_branch
        %228 = sbr.rel (%p226) target = $region36
      $region35: #{tpu_custom_call.1} parent=5 // pred_region
        // Predicated region
        $region37: #{tpu_custom_call.1} parent=35 // pred_check
          %p229 = pneg %p142
        $region38: #{tpu_custom_call.1} parent=35 // pred_check_branch
          %231 = sbr.rel (%p229) target = $region40
        $region39: #{tpu_custom_call.1} parent=35 // pred_region
          %s232 = sand.u32 %s132, 1
          %s233 = scalar_lea.sflag [#allocation3], %s232
          %s234 = sand.u32 %s132, 1
          %s235 = smul.addr %s234, 128
          %s236 = scalar_lea.vmem [#allocation2], %s235
          %238 = vsyncadd %s233, 0
          %s239 = smul.addr %s17, 16
          %s240 = smul.addr %s239, 8
          %s241 = scalar_lea.hbm %s5, %s240
          %s242 = sshll.u32 %s241, 4
          %s243 = int_to_ptr.hbm [resolvable:$true] %s242
          %s244 = sshll.u32 %s236, 4
          %s245 = int_to_ptr.vmem [resolvable:$true] %s244
          %250 = dma.hbm_to_vmem [thread:$0]  %s243, 2048, %s245, %s233, 128, 128, 8
        $region40: #{tpu_custom_call.1} parent=35 // pred_fallthru
          _
        // Predicated region
        $region41: #{tpu_custom_call.1} parent=35 // pred_check
          %p251 = pneg %p168
        $region42: #{tpu_custom_call.1} parent=35 // pred_check_branch
          %253 = sbr.rel (%p251) target = $region44
        $region43: #{tpu_custom_call.1} parent=35 // pred_region
          %p254 = scmp.lt.s32.totalorder %s17, 2
          %s255 = scalar_select %p254, %s17, 2
          %s256 = scalar_lea.vmem %s6, %s255
        $region44: #{tpu_custom_call.1} parent=35 // pred_fallthru
          _
      $region36: #{tpu_custom_call.1} parent=5 // pred_fallthru
        _
      %p257 = scmp.le.s32.totalorder 1, %s17
      %p258 = scmp.lt.s32.totalorder %s17, 4
      %p259 = pnand %p257, %p258
      %p260 = pneg %p259
      // Predicated region
      $region45: #{tpu_custom_call.1} parent=5 // pred_check
        _
      $region46: #{tpu_custom_call.1} parent=5 // pred_check_branch
        %262 = sbr.rel (%p259) target = $region48
      $region47: #{tpu_custom_call.1} parent=5 // pred_region
        %s263 = ssub.s32 %s17, 1
        %s264 = sand.u32 %s135, 1
        %s265 = scalar_lea.sflag [#allocation3], %s264
        %s266 = sand.u32 %s135, 1
        %s267 = smul.addr %s266, 128
        %s268 = scalar_lea.vmem [#allocation2], %s267
        // Predicated region
        $region49: #{tpu_custom_call.1} parent=47 // pred_check
          %p269 = pneg %p148
        $region50: #{tpu_custom_call.1} parent=47 // pred_check_branch
          %271 = sbr.rel (%p269) target = $region52
        $region51: #{tpu_custom_call.1} parent=47 // pred_region
          %273 = dma.done %s265, 2048
        $region52: #{tpu_custom_call.1} parent=47 // pred_fallthru
          _
        %p274 = pneg %p38
        %p275 = pneg %p35
        %p276 = pneg %p59
        %p277 = pneg %p56
        %p278 = pneg %p80
        %p279 = pneg %p77
        %p280 = pneg %p101
        %p281 = pneg %p98
        %p282 = pneg %p122
        %p283 = pneg %p119
        %s284 = sand.u32 %s135, 1
        %s285 = scalar_lea.sflag [#allocation3], %s284
        %s286 = sand.u32 %s135, 1
        %s287 = smul.addr %s286, 128
        %s288 = scalar_lea.vmem [#allocation2], %s287
        %p289 = pneg %p148
        %p290 = pneg %p145
        %p291 = scmp.lt.s32.totalorder %s22, 2
        %s292 = scalar_select %p291, %s22, 2
        %s293 = scalar_lea.vmem %s6, %s292
        %p294 = pneg %p174
        %p295 = pneg %p171
        %p296 = pneg %p195
        %p297 = pneg %p192
        %p298 = scmp.lt.s32.totalorder %s22, 2
        %s299 = scalar_select %p298, %s22, 2
        %s300 = scalar_lea.vmem %s6, %s299
        %p301 = scmp.eq.s32.totalorder %s22, 0
        // Predicated region
        $region53: #{tpu_custom_call.1} parent=47 // pred_check
          %p302 = pneg %p301
        $region54: #{tpu_custom_call.1} parent=47 // pred_check_branch
          %304 = sbr.rel (%p302) target = $region56
        $region55: #{tpu_custom_call.1} parent=47 // pred_region
          %v305 = vld [vmem:[%s0] sm:$0xff]
          %v306 = vld [vmem:[%s0 + $0x8] sm:$0xff]
          %v307 = vld [vmem:[%s0 + $0x10] sm:$0xff]
          %v308 = vld [vmem:[%s0 + $0x18] sm:$0xff]
          %v309 = vld [vmem:[%s0 + $0x20] sm:$0xff]
          %v310 = vld [vmem:[%s0 + $0x28] sm:$0xff]
          %v311 = vld [vmem:[%s0 + $0x30] sm:$0xff]
          %v312 = vld [vmem:[%s0 + $0x38] sm:$0xff]
          %v313 = vld [vmem:[%s0 + $0x40] sm:$0xff]
          %v314 = vld [vmem:[%s0 + $0x48] sm:$0xff]
          %v315 = vld [vmem:[%s0 + $0x50] sm:$0xff]
          %v316 = vld [vmem:[%s0 + $0x58] sm:$0xff]
          %v317 = vld [vmem:[%s0 + $0x60] sm:$0xff]
          %v318 = vld [vmem:[%s0 + $0x68] sm:$0xff]
          %v319 = vld [vmem:[%s0 + $0x70] sm:$0xff]
          %v320 = vld [vmem:[%s0 + $0x78] sm:$0xff]
          %321 = vst [vmem:[#allocation5] sm:$0xff] %v305
          %322 = vst [vmem:[#allocation5 + $0x8] sm:$0xff] %v306
          %323 = vst [vmem:[#allocation5 + $0x10] sm:$0xff] %v307
          %324 = vst [vmem:[#allocation5 + $0x18] sm:$0xff] %v308
          %325 = vst [vmem:[#allocation5 + $0x20] sm:$0xff] %v309
          %326 = vst [vmem:[#allocation5 + $0x28] sm:$0xff] %v310
          %327 = vst [vmem:[#allocation5 + $0x30] sm:$0xff] %v311
          %328 = vst [vmem:[#allocation5 + $0x38] sm:$0xff] %v312
          %329 = vst [vmem:[#allocation5 + $0x40] sm:$0xff] %v313
          %330 = vst [vmem:[#allocation5 + $0x48] sm:$0xff] %v314
          %331 = vst [vmem:[#allocation5 + $0x50] sm:$0xff] %v315
          %332 = vst [vmem:[#allocation5 + $0x58] sm:$0xff] %v316
          %333 = vst [vmem:[#allocation5 + $0x60] sm:$0xff] %v317
          %334 = vst [vmem:[#allocation5 + $0x68] sm:$0xff] %v318
          %335 = vst [vmem:[#allocation5 + $0x70] sm:$0xff] %v319
          %336 = vst [vmem:[#allocation5 + $0x78] sm:$0xff] %v320
        $region56: #{tpu_custom_call.1} parent=47 // pred_fallthru
          _
        %v337 = vld [vmem:[#allocation5] sm:$0xff]
        %v338 = vld [vmem:[#allocation5 + $0x8] sm:$0xff]
        %v339 = vld [vmem:[#allocation5 + $0x10] sm:$0xff]
        %v340 = vld [vmem:[#allocation5 + $0x18] sm:$0xff]
        %v341 = vld [vmem:[#allocation5 + $0x20] sm:$0xff]
        %v342 = vld [vmem:[#allocation5 + $0x28] sm:$0xff]
        %v343 = vld [vmem:[#allocation5 + $0x30] sm:$0xff]
        %v344 = vld [vmem:[#allocation5 + $0x38] sm:$0xff]
        %v345 = vld [vmem:[#allocation5 + $0x40] sm:$0xff]
        %v346 = vld [vmem:[#allocation5 + $0x48] sm:$0xff]
        %v347 = vld [vmem:[#allocation5 + $0x50] sm:$0xff]
        %v348 = vld [vmem:[#allocation5 + $0x58] sm:$0xff]
        %v349 = vld [vmem:[#allocation5 + $0x60] sm:$0xff]
        %v350 = vld [vmem:[#allocation5 + $0x68] sm:$0xff]
        %v351 = vld [vmem:[#allocation5 + $0x70] sm:$0xff]
        %v352 = vld [vmem:[#allocation5 + $0x78] sm:$0xff]
        %v353 = vld [vmem:[%s268] sm:$0xff]
        %v354 = vld [vmem:[%s268 + $0x8] sm:$0xff]
        %v355 = vld [vmem:[%s268 + $0x10] sm:$0xff]
        %v356 = vld [vmem:[%s268 + $0x18] sm:$0xff]
        %v357 = vld [vmem:[%s268 + $0x20] sm:$0xff]
        %v358 = vld [vmem:[%s268 + $0x28] sm:$0xff]
        %v359 = vld [vmem:[%s268 + $0x30] sm:$0xff]
        %v360 = vld [vmem:[%s268 + $0x38] sm:$0xff]
        %v361 = vld [vmem:[%s268 + $0x40] sm:$0xff]
        %v362 = vld [vmem:[%s268 + $0x48] sm:$0xff]
        %v363 = vld [vmem:[%s268 + $0x50] sm:$0xff]
        %v364 = vld [vmem:[%s268 + $0x58] sm:$0xff]
        %v365 = vld [vmem:[%s268 + $0x60] sm:$0xff]
        %v366 = vld [vmem:[%s268 + $0x68] sm:$0xff]
        %v367 = vld [vmem:[%s268 + $0x70] sm:$0xff]
        %v368 = vld [vmem:[%s268 + $0x78] sm:$0xff]
        %v369 = vld [vmem:[%s300] sm:$0x1]
        %370 = vmatpush.msra.mxu0 %v368
        %371 = vmatpush.msra.mxu0 %v367
        %372 = vmatpush.msra.mxu0 %v366
        %373 = vmatpush.msra.mxu0 %v365
        %374 = vmatpush.msra.mxu0 %v364
        %375 = vmatpush.msra.mxu0 %v363
        %376 = vmatpush.msra.mxu0 %v362
        %377 = vmatpush.msra.mxu0 %v361
        %378 = vmatpush.msra.mxu0 %v360
        %379 = vmatpush.msra.mxu0 %v359
        %380 = vmatpush.msra.mxu0 %v358
        %381 = vmatpush.msra.mxu0 %v357
        %382 = vmatpush.msra.mxu0 %v356
        %383 = vmatpush.msra.mxu0 %v355
        %384 = vmatpush.msra.mxu0 %v354
        %385 = vmatpush.msra.mxu0 %v353
        %386 = vmatmul.f32.gmra.mxu0 %v337
        %v387 = vpop.f32.mrf.mxu0
        %v388 = vadd.f32 0.0, %v387
        %389 = vmatmul.f32.gmra.mxu0 %v338
        %v390 = vpop.f32.mrf.mxu0
        %v391 = vadd.f32 0.0, %v390
        %392 = vmatmul.f32.gmra.mxu0 %v339
        %v393 = vpop.f32.mrf.mxu0
        %v394 = vadd.f32 0.0, %v393
        %395 = vmatmul.f32.gmra.mxu0 %v340
        %v396 = vpop.f32.mrf.mxu0
        %v397 = vadd.f32 0.0, %v396
        %398 = vmatmul.f32.gmra.mxu0 %v341
        %v399 = vpop.f32.mrf.mxu0
        %v400 = vadd.f32 0.0, %v399
        %401 = vmatmul.f32.gmra.mxu0 %v342
        %v402 = vpop.f32.mrf.mxu0
        %v403 = vadd.f32 0.0, %v402
        %404 = vmatmul.f32.gmra.mxu0 %v343
        %v405 = vpop.f32.mrf.mxu0
        %v406 = vadd.f32 0.0, %v405
        %407 = vmatmul.f32.gmra.mxu0 %v344
        %v408 = vpop.f32.mrf.mxu0
        %v409 = vadd.f32 0.0, %v408
        %410 = vmatmul.f32.gmra.mxu0 %v345
        %v411 = vpop.f32.mrf.mxu0
        %v412 = vadd.f32 0.0, %v411
        %413 = vmatmul.f32.gmra.mxu0 %v346
        %v414 = vpop.f32.mrf.mxu0
        %v415 = vadd.f32 0.0, %v414
        %416 = vmatmul.f32.gmra.mxu0 %v347
        %v417 = vpop.f32.mrf.mxu0
        %v418 = vadd.f32 0.0, %v417
        %419 = vmatmul.f32.gmra.mxu0 %v348
        %v420 = vpop.f32.mrf.mxu0
        %v421 = vadd.f32 0.0, %v420
        %422 = vmatmul.f32.gmra.mxu0 %v349
        %v423 = vpop.f32.mrf.mxu0
        %v424 = vadd.f32 0.0, %v423
        %425 = vmatmul.f32.gmra.mxu0 %v350
        %v426 = vpop.f32.mrf.mxu0
        %v427 = vadd.f32 0.0, %v426
        %428 = vmatmul.f32.gmra.mxu0 %v351
        %v429 = vpop.f32.mrf.mxu0
        %v430 = vadd.f32 0.0, %v429
        %431 = vmatmul.f32.gmra.mxu0 %v352
        %v432 = vpop.f32.mrf.mxu0
        %v433 = vadd.f32 0.0, %v432
        %434 = vdwg.mxu0
        %v435 = vld [vmem:[%s2] sm:$0xf]
        %v436 = vld [vmem:[%s2 + $0x4] sm:$0xf]
        %v437 = vld [vmem:[%s2 + $0x8] sm:$0xf]
        %v438 = vld [vmem:[%s2 + $0xc] sm:$0xf]
        %v439 = vld [vmem:[%s2 + $0x10] sm:$0xf]
        %v440 = vld [vmem:[%s2 + $0x14] sm:$0xf]
        %v441 = vld [vmem:[%s2 + $0x18] sm:$0xf]
        %v442 = vld [vmem:[%s2 + $0x1c] sm:$0xf]
        %v443 = vld [vmem:[%s2 + $0x20] sm:$0xf]
        %v444 = vld [vmem:[%s2 + $0x24] sm:$0xf]
        %v445 = vld [vmem:[%s2 + $0x28] sm:$0xf]
        %v446 = vld [vmem:[%s2 + $0x2c] sm:$0xf]
        %v447 = vld [vmem:[%s2 + $0x30] sm:$0xf]
        %v448 = vld [vmem:[%s2 + $0x34] sm:$0xf]
        %v449 = vld [vmem:[%s2 + $0x38] sm:$0xf]
        %v450 = vld [vmem:[%s2 + $0x3c] sm:$0xf]
        %v451 = vpack.c.bf16 %v391, %v388
        %v452 = vpack.c.bf16 %v397, %v394
        %v453 = vpack.c.bf16 %v403, %v400
        %v454 = vpack.c.bf16 %v409, %v406
        %v455 = vpack.c.bf16 %v415, %v412
        %v456 = vpack.c.bf16 %v421, %v418
        %v457 = vpack.c.bf16 %v427, %v424
        %v458 = vpack.c.bf16 %v433, %v430
        %v475 = vunpack.c.l.b16 %v435
        %v476 = vunpack.c.l.b16 %v436
        %v477 = vunpack.c.l.b16 %v437
        %v478 = vunpack.c.l.b16 %v438
        %v479 = vunpack.c.l.b16 %v439
        %v480 = vunpack.c.l.b16 %v440
        %v481 = vunpack.c.l.b16 %v441
        %v482 = vunpack.c.l.b16 %v442
        %v483 = vunpack.c.l.b16 %v443
        %v484 = vunpack.c.l.b16 %v444
        %v485 = vunpack.c.l.b16 %v445
        %v486 = vunpack.c.l.b16 %v446
        %v487 = vunpack.c.l.b16 %v447
        %v488 = vunpack.c.l.b16 %v448
        %v489 = vunpack.c.l.b16 %v449
        %v490 = vunpack.c.l.b16 %v450
        %v491 = vpack.c.b16 %v476, %v475
        %v492 = vpack.c.b16 %v478, %v477
        %v493 = vpack.c.b16 %v480, %v479
        %v494 = vpack.c.b16 %v482, %v481
        %v495 = vpack.c.b16 %v484, %v483
        %v496 = vpack.c.b16 %v486, %v485
        %v497 = vpack.c.b16 %v488, %v487
        %v498 = vpack.c.b16 %v490, %v489
        %507 = vmatpush.bf16.msra.mxu0 %v458
        %508 = vmatpush.bf16.msra.mxu0 %v457
        %509 = vmatpush.bf16.msra.mxu0 %v456
        %510 = vmatpush.bf16.msra.mxu0 %v455
        %511 = vmatpush.bf16.msra.mxu0 %v454
        %512 = vmatpush.bf16.msra.mxu0 %v453
        %513 = vmatpush.bf16.msra.mxu0 %v452
        %514 = vmatpush.bf16.msra.mxu0 %v451
        %515 = vmatmul.bf16.gmra.mxu0 %v491
        %v516 = vpop.f32.mrf.mxu0
        %v517 = vadd.f32 0.0, %v516
        %v518 = vpop.f32.mrf.mxu0
        %v519 = vadd.f32 0.0, %v518
        %520 = vmatmul.bf16.gmra.mxu0 %v492
        %v521 = vpop.f32.mrf.mxu0
        %v522 = vadd.f32 0.0, %v521
        %v523 = vpop.f32.mrf.mxu0
        %v524 = vadd.f32 0.0, %v523
        %525 = vmatmul.bf16.gmra.mxu0 %v493
        %v526 = vpop.f32.mrf.mxu0
        %v527 = vadd.f32 0.0, %v526
        %v528 = vpop.f32.mrf.mxu0
        %v529 = vadd.f32 0.0, %v528
        %530 = vmatmul.bf16.gmra.mxu0 %v494
        %v531 = vpop.f32.mrf.mxu0
        %v532 = vadd.f32 0.0, %v531
        %v533 = vpop.f32.mrf.mxu0
        %v534 = vadd.f32 0.0, %v533
        %535 = vmatmul.bf16.gmra.mxu0 %v495
        %v536 = vpop.f32.mrf.mxu0
        %v537 = vadd.f32 0.0, %v536
        %v538 = vpop.f32.mrf.mxu0
        %v539 = vadd.f32 0.0, %v538
        %540 = vmatmul.bf16.gmra.mxu0 %v496
        %v541 = vpop.f32.mrf.mxu0
        %v542 = vadd.f32 0.0, %v541
        %v543 = vpop.f32.mrf.mxu0
        %v544 = vadd.f32 0.0, %v543
        %545 = vmatmul.bf16.gmra.mxu0 %v497
        %v546 = vpop.f32.mrf.mxu0
        %v547 = vadd.f32 0.0, %v546
        %v548 = vpop.f32.mrf.mxu0
        %v549 = vadd.f32 0.0, %v548
        %550 = vmatmul.bf16.gmra.mxu0 %v498
        %v551 = vpop.f32.mrf.mxu0
        %v552 = vadd.f32 0.0, %v551
        %v553 = vpop.f32.mrf.mxu0
        %v554 = vadd.f32 0.0, %v553
        %555 = vdwg.mxu0
        %v556 = vld [vmem:[%s4] sm:$0xff]
        %v557 = vld [vmem:[%s4 + $0x8] sm:$0xff]
        %v558 = vld [vmem:[%s4 + $0x10] sm:$0xff]
        %v559 = vld [vmem:[%s4 + $0x18] sm:$0xff]
        %v560 = vld [vmem:[%s4 + $0x20] sm:$0xff]
        %v561 = vld [vmem:[%s4 + $0x28] sm:$0xff]
        %v562 = vld [vmem:[%s4 + $0x30] sm:$0xff]
        %v563 = vld [vmem:[%s4 + $0x38] sm:$0xff]
        %v564 = vld [vmem:[%s4 + $0x40] sm:$0xff]
        %v565 = vld [vmem:[%s4 + $0x48] sm:$0xff]
        %v566 = vld [vmem:[%s4 + $0x50] sm:$0xff]
        %v567 = vld [vmem:[%s4 + $0x58] sm:$0xff]
        %v568 = vld [vmem:[%s4 + $0x60] sm:$0xff]
        %v569 = vld [vmem:[%s4 + $0x68] sm:$0xff]
        %v570 = vld [vmem:[%s4 + $0x70] sm:$0xff]
        %v571 = vld [vmem:[%s4 + $0x78] sm:$0xff]
        %573 = vset.pattern.permute.xlu0 0
        %574 = vperm.xlu0 %573, %v556
        %v575 = vpop.permute.xlu0 %574
        %578 = vset.pattern.permute.xlu0 0
        %579 = vperm.xlu0 %578, %v557
        %v580 = vpop.permute.xlu0 %579
        %583 = vset.pattern.permute.xlu0 0
        %584 = vperm.xlu0 %583, %v558
        %v585 = vpop.permute.xlu0 %584
        %588 = vset.pattern.permute.xlu0 0
        %589 = vperm.xlu0 %588, %v559
        %v590 = vpop.permute.xlu0 %589
        %593 = vset.pattern.permute.xlu0 0
        %594 = vperm.xlu0 %593, %v560
        %v595 = vpop.permute.xlu0 %594
        %598 = vset.pattern.permute.xlu0 0
        %599 = vperm.xlu0 %598, %v561
        %v600 = vpop.permute.xlu0 %599
        %603 = vset.pattern.permute.xlu0 0
        %604 = vperm.xlu0 %603, %v562
        %v605 = vpop.permute.xlu0 %604
        %608 = vset.pattern.permute.xlu0 0
        %609 = vperm.xlu0 %608, %v563
        %v610 = vpop.permute.xlu0 %609
        %613 = vset.pattern.permute.xlu0 0
        %614 = vperm.xlu0 %613, %v564
        %v615 = vpop.permute.xlu0 %614
        %618 = vset.pattern.permute.xlu0 0
        %619 = vperm.xlu0 %618, %v565
        %v620 = vpop.permute.xlu0 %619
        %623 = vset.pattern.permute.xlu0 0
        %624 = vperm.xlu0 %623, %v566
        %v625 = vpop.permute.xlu0 %624
        %628 = vset.pattern.permute.xlu0 0
        %629 = vperm.xlu0 %628, %v567
        %v630 = vpop.permute.xlu0 %629
        %633 = vset.pattern.permute.xlu0 0
        %634 = vperm.xlu0 %633, %v568
        %v635 = vpop.permute.xlu0 %634
        %638 = vset.pattern.permute.xlu0 0
        %639 = vperm.xlu0 %638, %v569
        %v640 = vpop.permute.xlu0 %639
        %643 = vset.pattern.permute.xlu0 0
        %644 = vperm.xlu0 %643, %v570
        %v645 = vpop.permute.xlu0 %644
        %648 = vset.pattern.permute.xlu0 0
        %649 = vperm.xlu0 %648, %v571
        %v650 = vpop.permute.xlu0 %649
        %v652 = vmul.f32 %v517, %v575
        %v653 = vmul.f32 %v519, %v580
        %v654 = vmul.f32 %v522, %v585
        %v655 = vmul.f32 %v524, %v590
        %v656 = vmul.f32 %v527, %v595
        %v657 = vmul.f32 %v529, %v600
        %v658 = vmul.f32 %v532, %v605
        %v659 = vmul.f32 %v534, %v610
        %v660 = vmul.f32 %v537, %v615
        %v661 = vmul.f32 %v539, %v620
        %v662 = vmul.f32 %v542, %v625
        %v663 = vmul.f32 %v544, %v630
        %v664 = vmul.f32 %v547, %v635
        %v665 = vmul.f32 %v549, %v640
        %v666 = vmul.f32 %v552, %v645
        %v667 = vmul.f32 %v554, %v650
        %v668 = vld [vmem:[%s1] sm:$0xf]
        %v669 = vld [vmem:[%s1 + $0x4] sm:$0xf]
        %v670 = vld [vmem:[%s1 + $0x8] sm:$0xf]
        %v671 = vld [vmem:[%s1 + $0xc] sm:$0xf]
        %v672 = vld [vmem:[%s1 + $0x10] sm:$0xf]
        %v673 = vld [vmem:[%s1 + $0x14] sm:$0xf]
        %v674 = vld [vmem:[%s1 + $0x18] sm:$0xf]
        %v675 = vld [vmem:[%s1 + $0x1c] sm:$0xf]
        %v676 = vld [vmem:[%s1 + $0x20] sm:$0xf]
        %v677 = vld [vmem:[%s1 + $0x24] sm:$0xf]
        %v678 = vld [vmem:[%s1 + $0x28] sm:$0xf]
        %v679 = vld [vmem:[%s1 + $0x2c] sm:$0xf]
        %v680 = vld [vmem:[%s1 + $0x30] sm:$0xf]
        %v681 = vld [vmem:[%s1 + $0x34] sm:$0xf]
        %v682 = vld [vmem:[%s1 + $0x38] sm:$0xf]
        %v683 = vld [vmem:[%s1 + $0x3c] sm:$0xf]
        %v684 = vpack.c.bf16 %v653, %v652
        %v685 = vpack.c.bf16 %v655, %v654
        %v686 = vpack.c.bf16 %v657, %v656
        %v687 = vpack.c.bf16 %v659, %v658
        %v688 = vpack.c.bf16 %v661, %v660
        %v689 = vpack.c.bf16 %v663, %v662
        %v690 = vpack.c.bf16 %v665, %v664
        %v691 = vpack.c.bf16 %v667, %v666
        %v708 = vunpack.c.l.b16 %v668
        %v709 = vunpack.c.l.b16 %v669
        %v710 = vunpack.c.l.b16 %v670
        %v711 = vunpack.c.l.b16 %v671
        %v712 = vunpack.c.l.b16 %v672
        %v713 = vunpack.c.l.b16 %v673
        %v714 = vunpack.c.l.b16 %v674
        %v715 = vunpack.c.l.b16 %v675
        %v716 = vunpack.c.l.b16 %v676
        %v717 = vunpack.c.l.b16 %v677
        %v718 = vunpack.c.l.b16 %v678
        %v719 = vunpack.c.l.b16 %v679
        %v720 = vunpack.c.l.b16 %v680
        %v721 = vunpack.c.l.b16 %v681
        %v722 = vunpack.c.l.b16 %v682
        %v723 = vunpack.c.l.b16 %v683
        %v724 = vpack.c.b16 %v709, %v708
        %v725 = vpack.c.b16 %v711, %v710
        %v726 = vpack.c.b16 %v713, %v712
        %v727 = vpack.c.b16 %v715, %v714
        %v728 = vpack.c.b16 %v717, %v716
        %v729 = vpack.c.b16 %v719, %v718
        %v730 = vpack.c.b16 %v721, %v720
        %v731 = vpack.c.b16 %v723, %v722
        %740 = vmatpush.bf16.msra.mxu0 %v691
        %741 = vmatpush.bf16.msra.mxu0 %v690
        %742 = vmatpush.bf16.msra.mxu0 %v689
        %743 = vmatpush.bf16.msra.mxu0 %v688
        %744 = vmatpush.bf16.msra.mxu0 %v687
        %745 = vmatpush.bf16.msra.mxu0 %v686
        %746 = vmatpush.bf16.msra.mxu0 %v685
        %747 = vmatpush.bf16.msra.mxu0 %v684
        %748 = vmatmul.bf16.gmra.mxu0 %v724
        %v749 = vpop.f32.mrf.mxu0
        %v750 = vadd.f32 0.0, %v749
        %v751 = vpop.f32.mrf.mxu0
        %v752 = vadd.f32 0.0, %v751
        %753 = vmatmul.bf16.gmra.mxu0 %v725
        %v754 = vpop.f32.mrf.mxu0
        %v755 = vadd.f32 0.0, %v754
        %v756 = vpop.f32.mrf.mxu0
        %v757 = vadd.f32 0.0, %v756
        %758 = vmatmul.bf16.gmra.mxu0 %v726
        %v759 = vpop.f32.mrf.mxu0
        %v760 = vadd.f32 0.0, %v759
        %v761 = vpop.f32.mrf.mxu0
        %v762 = vadd.f32 0.0, %v761
        %763 = vmatmul.bf16.gmra.mxu0 %v727
        %v764 = vpop.f32.mrf.mxu0
        %v765 = vadd.f32 0.0, %v764
        %v766 = vpop.f32.mrf.mxu0
        %v767 = vadd.f32 0.0, %v766
        %768 = vmatmul.bf16.gmra.mxu0 %v728
        %v769 = vpop.f32.mrf.mxu0
        %v770 = vadd.f32 0.0, %v769
        %v771 = vpop.f32.mrf.mxu0
        %v772 = vadd.f32 0.0, %v771
        %773 = vmatmul.bf16.gmra.mxu0 %v729
        %v774 = vpop.f32.mrf.mxu0
        %v775 = vadd.f32 0.0, %v774
        %v776 = vpop.f32.mrf.mxu0
        %v777 = vadd.f32 0.0, %v776
        %778 = vmatmul.bf16.gmra.mxu0 %v730
        %v779 = vpop.f32.mrf.mxu0
        %v780 = vadd.f32 0.0, %v779
        %v781 = vpop.f32.mrf.mxu0
        %v782 = vadd.f32 0.0, %v781
        %783 = vmatmul.bf16.gmra.mxu0 %v731
        %v784 = vpop.f32.mrf.mxu0
        %v785 = vadd.f32 0.0, %v784
        %v786 = vpop.f32.mrf.mxu0
        %v787 = vadd.f32 0.0, %v786
        %788 = vdwg.mxu0
        %v789 = vld [vmem:[%s3] sm:$0xff]
        %v790 = vld [vmem:[%s3 + $0x8] sm:$0xff]
        %v791 = vld [vmem:[%s3 + $0x10] sm:$0xff]
        %v792 = vld [vmem:[%s3 + $0x18] sm:$0xff]
        %v793 = vld [vmem:[%s3 + $0x20] sm:$0xff]
        %v794 = vld [vmem:[%s3 + $0x28] sm:$0xff]
        %v795 = vld [vmem:[%s3 + $0x30] sm:$0xff]
        %v796 = vld [vmem:[%s3 + $0x38] sm:$0xff]
        %v797 = vld [vmem:[%s3 + $0x40] sm:$0xff]
        %v798 = vld [vmem:[%s3 + $0x48] sm:$0xff]
        %v799 = vld [vmem:[%s3 + $0x50] sm:$0xff]
        %v800 = vld [vmem:[%s3 + $0x58] sm:$0xff]
        %v801 = vld [vmem:[%s3 + $0x60] sm:$0xff]
        %v802 = vld [vmem:[%s3 + $0x68] sm:$0xff]
        %v803 = vld [vmem:[%s3 + $0x70] sm:$0xff]
        %v804 = vld [vmem:[%s3 + $0x78] sm:$0xff]
        %806 = vset.pattern.permute.xlu0 0
        %807 = vperm.xlu0 %806, %v789
        %v808 = vpop.permute.xlu0 %807
        %811 = vset.pattern.permute.xlu0 0
        %812 = vperm.xlu0 %811, %v790
        %v813 = vpop.permute.xlu0 %812
        %816 = vset.pattern.permute.xlu0 0
        %817 = vperm.xlu0 %816, %v791
        %v818 = vpop.permute.xlu0 %817
        %821 = vset.pattern.permute.xlu0 0
        %822 = vperm.xlu0 %821, %v792
        %v823 = vpop.permute.xlu0 %822
        %826 = vset.pattern.permute.xlu0 0
        %827 = vperm.xlu0 %826, %v793
        %v828 = vpop.permute.xlu0 %827
        %831 = vset.pattern.permute.xlu0 0
        %832 = vperm.xlu0 %831, %v794
        %v833 = vpop.permute.xlu0 %832
        %836 = vset.pattern.permute.xlu0 0
        %837 = vperm.xlu0 %836, %v795
        %v838 = vpop.permute.xlu0 %837
        %841 = vset.pattern.permute.xlu0 0
        %842 = vperm.xlu0 %841, %v796
        %v843 = vpop.permute.xlu0 %842
        %846 = vset.pattern.permute.xlu0 0
        %847 = vperm.xlu0 %846, %v797
        %v848 = vpop.permute.xlu0 %847
        %851 = vset.pattern.permute.xlu0 0
        %852 = vperm.xlu0 %851, %v798
        %v853 = vpop.permute.xlu0 %852
        %856 = vset.pattern.permute.xlu0 0
        %857 = vperm.xlu0 %856, %v799
        %v858 = vpop.permute.xlu0 %857
        %861 = vset.pattern.permute.xlu0 0
        %862 = vperm.xlu0 %861, %v800
        %v863 = vpop.permute.xlu0 %862
        %866 = vset.pattern.permute.xlu0 0
        %867 = vperm.xlu0 %866, %v801
        %v868 = vpop.permute.xlu0 %867
        %871 = vset.pattern.permute.xlu0 0
        %872 = vperm.xlu0 %871, %v802
        %v873 = vpop.permute.xlu0 %872
        %876 = vset.pattern.permute.xlu0 0
        %877 = vperm.xlu0 %876, %v803
        %v878 = vpop.permute.xlu0 %877
        %881 = vset.pattern.permute.xlu0 0
        %882 = vperm.xlu0 %881, %v804
        %v883 = vpop.permute.xlu0 %882
        %v885 = vmul.f32 %v808, %v750
        %v886 = vmul.f32 %v813, %v752
        %v887 = vmul.f32 %v818, %v755
        %v888 = vmul.f32 %v823, %v757
        %v889 = vmul.f32 %v828, %v760
        %v890 = vmul.f32 %v833, %v762
        %v891 = vmul.f32 %v838, %v765
        %v892 = vmul.f32 %v843, %v767
        %v893 = vmul.f32 %v848, %v770
        %v894 = vmul.f32 %v853, %v772
        %v895 = vmul.f32 %v858, %v775
        %v896 = vmul.f32 %v863, %v777
        %v897 = vmul.f32 %v868, %v780
        %v898 = vmul.f32 %v873, %v782
        %v899 = vmul.f32 %v878, %v785
        %v900 = vmul.f32 %v883, %v787
        %v902 = vperm.slane %v369, 0
        %v904 = vadd.f32 %v885, %v902
        %v905 = vadd.f32 %v886, %v902
        %v906 = vadd.f32 %v887, %v902
        %v907 = vadd.f32 %v888, %v902
        %v908 = vadd.f32 %v889, %v902
        %v909 = vadd.f32 %v890, %v902
        %v910 = vadd.f32 %v891, %v902
        %v911 = vadd.f32 %v892, %v902
        %v912 = vadd.f32 %v893, %v902
        %v913 = vadd.f32 %v894, %v902
        %v914 = vadd.f32 %v895, %v902
        %v915 = vadd.f32 %v896, %v902
        %v916 = vadd.f32 %v897, %v902
        %v917 = vadd.f32 %v898, %v902
        %v918 = vadd.f32 %v899, %v902
        %v919 = vadd.f32 %v900, %v902
        %v920 = vmax.f32 %v904, 0.0
        %v921 = vmax.f32 %v905, 0.0
        %v922 = vmax.f32 %v906, 0.0
        %v923 = vmax.f32 %v907, 0.0
        %v924 = vmax.f32 %v908, 0.0
        %v925 = vmax.f32 %v909, 0.0
        %v926 = vmax.f32 %v910, 0.0
        %v927 = vmax.f32 %v911, 0.0
        %v928 = vmax.f32 %v912, 0.0
        %v929 = vmax.f32 %v913, 0.0
        %v930 = vmax.f32 %v914, 0.0
        %v931 = vmax.f32 %v915, 0.0
        %v932 = vmax.f32 %v916, 0.0
        %v933 = vmax.f32 %v917, 0.0
        %v934 = vmax.f32 %v918, 0.0
        %v935 = vmax.f32 %v919, 0.0
        %936 = vst [vmem:[#allocation5] sm:$0xff] %v920
        %937 = vst [vmem:[#allocation5 + $0x8] sm:$0xff] %v921
        %938 = vst [vmem:[#allocation5 + $0x10] sm:$0xff] %v922
        %939 = vst [vmem:[#allocation5 + $0x18] sm:$0xff] %v923
        %940 = vst [vmem:[#allocation5 + $0x20] sm:$0xff] %v924
        %941 = vst [vmem:[#allocation5 + $0x28] sm:$0xff] %v925
        %942 = vst [vmem:[#allocation5 + $0x30] sm:$0xff] %v926
        %943 = vst [vmem:[#allocation5 + $0x38] sm:$0xff] %v927
        %944 = vst [vmem:[#allocation5 + $0x40] sm:$0xff] %v928
        %945 = vst [vmem:[#allocation5 + $0x48] sm:$0xff] %v929
        %946 = vst [vmem:[#allocation5 + $0x50] sm:$0xff] %v930
        %947 = vst [vmem:[#allocation5 + $0x58] sm:$0xff] %v931
        %948 = vst [vmem:[#allocation5 + $0x60] sm:$0xff] %v932
        %949 = vst [vmem:[#allocation5 + $0x68] sm:$0xff] %v933
        %950 = vst [vmem:[#allocation5 + $0x70] sm:$0xff] %v934
        %951 = vst [vmem:[#allocation5 + $0x78] sm:$0xff] %v935
        // Predicated region
        $region57: #{tpu_custom_call.1} parent=47 // pred_check
          %p952 = pneg %p192
        $region58: #{tpu_custom_call.1} parent=47 // pred_check_branch
          %954 = sbr.rel (%p952) target = $region60
        $region59: #{tpu_custom_call.1} parent=47 // pred_region
          %956 = vsyncadd [#allocation4], 0
          %s957 = sshll.u32 [#allocation5], 4
          %s958 = int_to_ptr.vmem [resolvable:$true] %s957
          %s959 = sshll.u32 %s7, 4
          %s960 = int_to_ptr.hbm [resolvable:$true] %s959
          %965 = dma.vmem_to_hbm [thread:$0]  %s958, 2048, %s960, [#allocation4], 128, 128, 8
        $region60: #{tpu_custom_call.1} parent=47 // pred_fallthru
          _
        // Predicated region
        $region61: #{tpu_custom_call.1} parent=47 // pred_check
          %p966 = pneg %p192
        $region62: #{tpu_custom_call.1} parent=47 // pred_check_branch
          %968 = sbr.rel (%p966) target = $region64
        $region63: #{tpu_custom_call.1} parent=47 // pred_region
          %970 = dma.done [#allocation4], 2048
        $region64: #{tpu_custom_call.1} parent=47 // pred_fallthru
          _
      $region48: #{tpu_custom_call.1} parent=5 // pred_fallthru
        _
      %p971 = scmp.le.s32.totalorder 2, %s17
      // Predicated region
      $region65: #{tpu_custom_call.1} parent=5 // pred_check
        %p972 = pneg %p971
      $region66: #{tpu_custom_call.1} parent=5 // pred_check_branch
        %974 = sbr.rel (%p972) target = $region68
      $region67: #{tpu_custom_call.1} parent=5 // pred_region
        %s975 = ssub.s32 %s17, 2
      $region68: #{tpu_custom_call.1} parent=5 // pred_fallthru
        _
    $region6: #{tpu_custom_call.1} parent=1 // loop_footer
      %s21 = sadd.s32 1, %s17
    $region7: #{tpu_custom_call.1} parent=1 // loop_footer_branch
      %16 = sbr.rel target = $region3
    $region8: #{tpu_custom_call.1} parent=1 // loop_exit
      _
    %976 = vsyncpa [#allocation3], 1
    %s977 = scalar_lea.sflag [#allocation3], 1
    %978 = vsyncpa %s977, 1
    %979 = vsyncpa [#allocation4], 1
    %s980 = scalar_lea.sflag [#allocation4], 1
    %981 = vsyncpa %s980, 1

// kernel: tpu_custom_call.1
$region0: #{tpu_custom_call.1}
  #allocation0 [shape = 'u32[]', space=smem, size = 0x4, offset = 0x4, fixed_abs, tag = 'smem constant byte address 0x4 - core index']
  #allocation1 [shape = 'u32[72,128]{1,0:T(1,128)}', space=vmem, size = 0x9000, scoped, tag = 'internal scratch']
  %s0 = inlined_call_operand.vmem [shape: f32[128,128], index: 0, kind: input, shape index: {}]
  %s1 = inlined_call_operand.vmem [shape: bf16[128,128], index: 1, kind: input, shape index: {}]
  %s2 = inlined_call_operand.vmem [shape: bf16[128,128], index: 2, kind: input, shape index: {}]
  %s3 = inlined_call_operand.vmem [shape: f32[128,1], index: 3, kind: input, shape index: {}]
  %s4 = inlined_call_operand.vmem [shape: f32[128,1], index: 4, kind: input, shape index: {}]
  %s5 = inlined_call_operand.hbm [shape: f32[3,128,128], index: 5, kind: input, shape index: {}]
  %s6 = inlined_call_operand.vmem [shape: f32[3,1,128], index: 6, kind: input, shape index: {}]
  %s7 = inlined_call_operand.hbm [shape: f32[128,128], index: 7, kind: output, shape index: {}]
  %s8 = sld [smem:[#allocation0]]
  $region69: #{tpu_custom_call.1} parent=0
    _
  %s10 = ssub.s32 1, %s8
  %s11 = scalar_select 0, %s10, %s8
  $region1: #{tpu_custom_call.1} parent=0
    #allocation2 [shape = 'u8[131072]{0}', space=vmem, size = 0x20000, scoped, tag = 'input window, operand 5']
    #allocation3 [shape = 's32[2]{0}', space=sflag, size = 0x8, scoped, tag = 'scoped memory for tpu_custom_call.1']
    #allocation4 [shape = 's32[2]{0}', space=sflag, size = 0x8, scoped, tag = 'scoped memory for tpu_custom_call.1']
    #allocation5 [shape = 'u8[65536]{0}', space=vmem, size = 0x10000, scoped, tag = 'output window, operand 0, single buffered']
    %12 = vsyncpa [#allocation3], 0
    %s13 = scalar_lea.sflag [#allocation3], 1
    %14 = vsyncpa %s13, 0
    %15 = vsyncpa [#allocation4], 0
    loop: start=0, step=1, limit=5
    $region2: #{tpu_custom_call.1} parent=1 // loop_pre_header
      _
    $region3: #{tpu_custom_call.1} parent=1 // loop_header
      %s17 = sphi 0, %s21
      %p18 = scmp.ge.s32.totalorder %s17, 5
      %s25 = sphi 0, %s25
      %s27 = sphi 0, %s25
      %s28 = sphi 0, %s27
      %s42 = sphi 0, %s28
      %s46 = sphi 0, %s46
      %s48 = sphi 0, %s46
      %s49 = sphi 0, %s48
      %s63 = sphi 0, %s49
      %s67 = sphi 0, %s67
      %s69 = sphi 0, %s67
      %s70 = sphi 0, %s69
      %s84 = sphi 0, %s70
      %s88 = sphi 0, %s88
      %s90 = sphi 0, %s88
      %s91 = sphi 0, %s90
      %s105 = sphi 0, %s91
      %s109 = sphi 0, %s109
      %s111 = sphi 0, %s109
      %s112 = sphi 0, %s111
      %s126 = sphi 0, %s112
      %s132 = sphi 0, %s134
      %s135 = sphi 0, %s132
      %s136 = sphi 0, %s135
      %s152 = sphi 0, %s136
      %s158 = sphi 0, %s160
      %s161 = sphi 0, %s158
      %s162 = sphi 0, %s161
      %s178 = sphi 0, %s162
      %s182 = sphi 0, %s182
      %s184 = sphi 0, %s182
      %s185 = sphi 0, %s184
      %s199 = sphi 0, %s185
    $region4: #{tpu_custom_call.1} parent=1 // loop_header_branch
      %20 = sbr.rel (%p18) target = $region8
    $region5: #{tpu_custom_call.1} parent=1 // loop_body
      %s22 = ssub.s32 %s17, 1
      %s23 = ssub.s32 %s17, 2
      %s24 = sadd.s32 %s17, 1
      %s26 = sadd.s32 %s25, 1
      %p29 = scmp.eq.s32.totalorder %s17, 2
      %p30 = scmp.ne.s32.totalorder %s25, %s27
      %p31 = scmp.eq.s32.totalorder %s17, 0
      %p32 = por %p30, %p31
      %p33 = scmp.ne.s32.totalorder %s25, %s27
      %p34 = scmp.eq.s32.totalorder %s22, 2
      %p35 = por %p33, %p34
      %p36 = scmp.ne.s32.totalorder %s27, %s28
      %p37 = scmp.eq.s32.totalorder %s22, 0
      %p38 = por %p36, %p37
      %p39 = scmp.ne.s32.totalorder %s27, %s28
      %p40 = scmp.eq.s32.totalorder %s23, 2
      %p41 = por %p39, %p40
      %p43 = scmp.ne.s32.totalorder %s28, %s42
      %p44 = scmp.eq.s32.totalorder %s23, 0
      %p45 = por %p43, %p44
      %s47 = sadd.s32 %s46, 1
      %p50 = scmp.eq.s32.totalorder %s17, 2
      %p51 = scmp.ne.s32.totalorder %s46, %s48
      %p52 = scmp.eq.s32.totalorder %s17, 0
      %p53 = por %p51, %p52
      %p54 = scmp.ne.s32.totalorder %s46, %s48
      %p55 = scmp.eq.s32.totalorder %s22, 2
      %p56 = por %p54, %p55
      %p57 = scmp.ne.s32.totalorder %s48, %s49
      %p58 = scmp.eq.s32.totalorder %s22, 0
      %p59 = por %p57, %p58
      %p60 = scmp.ne.s32.totalorder %s48, %s49
      %p61 = scmp.eq.s32.totalorder %s23, 2
      %p62 = por %p60, %p61
      %p64 = scmp.ne.s32.totalorder %s49, %s63
      %p65 = scmp.eq.s32.totalorder %s23, 0
      %p66 = por %p64, %p65
      %s68 = sadd.s32 %s67, 1
      %p71 = scmp.eq.s32.totalorder %s17, 2
      %p72 = scmp.ne.s32.totalorder %s67, %s69
      %p73 = scmp.eq.s32.totalorder %s17, 0
      %p74 = por %p72, %p73
      %p75 = scmp.ne.s32.totalorder %s67, %s69
      %p76 = scmp.eq.s32.totalorder %s22, 2
      %p77 = por %p75, %p76
      %p78 = scmp.ne.s32.totalorder %s69, %s70
      %p79 = scmp.eq.s32.totalorder %s22, 0
      %p80 = por %p78, %p79
      %p81 = scmp.ne.s32.totalorder %s69, %s70
      %p82 = scmp.eq.s32.totalorder %s23, 2
      %p83 = por %p81, %p82
      %p85 = scmp.ne.s32.totalorder %s70, %s84
      %p86 = scmp.eq.s32.totalorder %s23, 0
      %p87 = por %p85, %p86
      %s89 = sadd.s32 %s88, 1
      %p92 = scmp.eq.s32.totalorder %s17, 2
      %p93 = scmp.ne.s32.totalorder %s88, %s90
      %p94 = scmp.eq.s32.totalorder %s17, 0
      %p95 = por %p93, %p94
      %p96 = scmp.ne.s32.totalorder %s88, %s90
      %p97 = scmp.eq.s32.totalorder %s22, 2
      %p98 = por %p96, %p97
      %p99 = scmp.ne.s32.totalorder %s90, %s91
      %p100 = scmp.eq.s32.totalorder %s22, 0
      %p101 = por %p99, %p100
      %p102 = scmp.ne.s32.totalorder %s90, %s91
      %p103 = scmp.eq.s32.totalorder %s23, 2
      %p104 = por %p102, %p103
      %p106 = scmp.ne.s32.totalorder %s91, %s105
      %p107 = scmp.eq.s32.totalorder %s23, 0
      %p108 = por %p106, %p107
      %s110 = sadd.s32 %s109, 1
      %p113 = scmp.eq.s32.totalorder %s17, 2
      %p114 = scmp.ne.s32.totalorder %s109, %s111
      %p115 = scmp.eq.s32.totalorder %s17, 0
      %p116 = por %p114, %p115
      %p117 = scmp.ne.s32.totalorder %s109, %s111
      %p118 = scmp.eq.s32.totalorder %s22, 2
      %p119 = por %p117, %p118
      %p120 = scmp.ne.s32.totalorder %s111, %s112
      %p121 = scmp.eq.s32.totalorder %s22, 0
      %p122 = por %p120, %p121
      %p123 = scmp.ne.s32.totalorder %s111, %s112
      %p124 = scmp.eq.s32.totalorder %s23, 2
      %p125 = por %p123, %p124
      %p127 = scmp.ne.s32.totalorder %s112, %s126
      %p128 = scmp.eq.s32.totalorder %s23, 0
      %p129 = por %p127, %p128
      %s130 = ssub.s32 %s17, %s24
      %p131 = scmp.eq.s32.totalorder %s130, 0
      %s133 = sadd.s32 %s132, 1
      %s134 = scalar_select %p131, %s132, %s133
      %p137 = pneg %p131
      %p138 = scmp.eq.s32.totalorder %s17, 2
      %p139 = por %p137, %p138
      %p140 = scmp.ne.s32.totalorder %s132, %s135
      %p141 = scmp.eq.s32.totalorder %s17, 0
      %p142 = por %p140, %p141
      %p143 = scmp.ne.s32.totalorder %s132, %s135
      %p144 = scmp.eq.s32.totalorder %s22, 2
      %p145 = por %p143, %p144
      %p146 = scmp.ne.s32.totalorder %s135, %s136
      %p147 = scmp.eq.s32.totalorder %s22, 0
      %p148 = por %p146, %p147
      %p149 = scmp.ne.s32.totalorder %s135, %s136
      %p150 = scmp.eq.s32.totalorder %s23, 2
      %p151 = por %p149, %p150
      %p153 = scmp.ne.s32.totalorder %s136, %s152
      %p154 = scmp.eq.s32.totalorder %s23, 0
      %p155 = por %p153, %p154
      %s156 = ssub.s32 %s17, %s24
      %p157 = scmp.eq.s32.totalorder %s156, 0
      %s159 = sadd.s32 %s158, 1
      %s160 = scalar_select %p157, %s158, %s159
      %p163 = pneg %p157
      %p164 = scmp.eq.s32.totalorder %s17, 2
      %p165 = por %p163, %p164
      %p166 = scmp.ne.s32.totalorder %s158, %s161
      %p167 = scmp.eq.s32.totalorder %s17, 0
      %p168 = por %p166, %p167
      %p169 = scmp.ne.s32.totalorder %s158, %s161
      %p170 = scmp.eq.s32.totalorder %s22, 2
      %p171 = por %p169, %p170
      %p172 = scmp.ne.s32.totalorder %s161, %s162
      %p173 = scmp.eq.s32.totalorder %s22, 0
      %p174 = por %p172, %p173
      %p175 = scmp.ne.s32.totalorder %s161, %s162
      %p176 = scmp.eq.s32.totalorder %s23, 2
      %p177 = por %p175, %p176
      %p179 = scmp.ne.s32.totalorder %s162, %s178
      %p180 = scmp.eq.s32.totalorder %s23, 0
      %p181 = por %p179, %p180
      %s183 = sadd.s32 %s182, 1
      %p186 = scmp.eq.s32.totalorder %s17, 2
      %p187 = scmp.ne.s32.totalorder %s182, %s184
      %p188 = scmp.eq.s32.totalorder %s17, 0
      %p189 = por %p187, %p188
      %p190 = scmp.ne.s32.totalorder %s182, %s184
      %p191 = scmp.eq.s32.totalorder %s22, 2
      %p192 = por %p190, %p191
      %p193 = scmp.ne.s32.totalorder %s184, %s185
      %p194 = scmp.eq.s32.totalorder %s22, 0
      %p195 = por %p193, %p194
      %p196 = scmp.ne.s32.totalorder %s184, %s185
      %p197 = scmp.eq.s32.totalorder %s23, 2
      %p198 = por %p196, %p197
      %p200 = scmp.ne.s32.totalorder %s185, %s199
      %p201 = scmp.eq.s32.totalorder %s23, 0
      %p202 = por %p200, %p201
      %p203 = scmp.le.s32.totalorder 1, %s17
      %p204 = scmp.lt.s32.totalorder %s17, 4
      %p205 = pnand %p203, %p204
      %p206 = pneg %p205
      // Predicated region
      $region9: #{tpu_custom_call.1} parent=5 // pred_check
        _
      $region10: #{tpu_custom_call.1} parent=5 // pred_check_branch
        %208 = sbr.rel (%p205) target = $region12
      $region11: #{tpu_custom_call.1} parent=5 // pred_region
        %s209 = ssub.s32 %s17, 1
        // Predicated region
        $region13: #{tpu_custom_call.1} parent=11 // pred_check
          %p210 = pneg %p38
        $region14: #{tpu_custom_call.1} parent=11 // pred_check_branch
          %212 = sbr.rel (%p210) target = $region16
        $region15: #{tpu_custom_call.1} parent=11 // pred_region
          _
        $region16: #{tpu_custom_call.1} parent=11 // pred_fallthru
          _
        // Predicated region
        $region17: #{tpu_custom_call.1} parent=11 // pred_check
          %p213 = pneg %p59
        $region18: #{tpu_custom_call.1} parent=11 // pred_check_branch
          %215 = sbr.rel (%p213) target = $region20
        $region19: #{tpu_custom_call.1} parent=11 // pred_region
          _
        $region20: #{tpu_custom_call.1} parent=11 // pred_fallthru
          _
        // Predicated region
        $region21: #{tpu_custom_call.1} parent=11 // pred_check
          %p216 = pneg %p80
        $region22: #{tpu_custom_call.1} parent=11 // pred_check_branch
          %218 = sbr.rel (%p216) target = $region24
        $region23: #{tpu_custom_call.1} parent=11 // pred_region
          _
        $region24: #{tpu_custom_call.1} parent=11 // pred_fallthru
          _
        // Predicated region
        $region25: #{tpu_custom_call.1} parent=11 // pred_check
          %p219 = pneg %p101
        $region26: #{tpu_custom_call.1} parent=11 // pred_check_branch
          %221 = sbr.rel (%p219) target = $region28
        $region27: #{tpu_custom_call.1} parent=11 // pred_region
          _
        $region28: #{tpu_custom_call.1} parent=11 // pred_fallthru
          _
        // Predicated region
        $region29: #{tpu_custom_call.1} parent=11 // pred_check
          %p222 = pneg %p122
        $region30: #{tpu_custom_call.1} parent=11 // pred_check_branch
          %224 = sbr.rel (%p222) target = $region32
        $region31: #{tpu_custom_call.1} parent=11 // pred_region
          _
        $region32: #{tpu_custom_call.1} parent=11 // pred_fallthru
          _
      $region12: #{tpu_custom_call.1} parent=5 // pred_fallthru
        _
      %p225 = scmp.lt.s32.totalorder %s17, 3
      // Predicated region
      $region33: #{tpu_custom_call.1} parent=5 // pred_check
        %p226 = pneg %p225
      $region34: #{tpu_custom_call.1} parent=5 // pred_check_branch
        %228 = sbr.rel (%p226) target = $region36
      $region35: #{tpu_custom_call.1} parent=5 // pred_region
        // Predicated region
        $region37: #{tpu_custom_call.1} parent=35 // pred_check
          %p229 = pneg %p142
        $region38: #{tpu_custom_call.1} parent=35 // pred_check_branch
          %231 = sbr.rel (%p229) target = $region40
        $region39: #{tpu_custom_call.1} parent=35 // pred_region
          %s232 = sand.u32 %s132, 1
          %s233 = scalar_lea.sflag [#allocation3], %s232
          %s234 = sand.u32 %s132, 1
          %s235 = smul.addr %s234, 128
          %s236 = scalar_lea.vmem [#allocation2], %s235
          %238 = vsyncadd %s233, 0
          %s239 = smul.addr %s17, 16
          %s240 = smul.addr %s239, 8
          %s241 = scalar_lea.hbm %s5, %s240
          %s242 = sshll.u32 %s241, 4
          %s243 = int_to_ptr.hbm [resolvable:$true] %s242
          %s244 = sshll.u32 %s236, 4
          %s245 = int_to_ptr.vmem [resolvable:$true] %s244
          %250 = dma.hbm_to_vmem [thread:$0]  %s243, 2048, %s245, %s233, 128, 128, 8
        $region40: #{tpu_custom_call.1} parent=35 // pred_fallthru
          _
        // Predicated region
        $region41: #{tpu_custom_call.1} parent=35 // pred_check
          %p251 = pneg %p168
        $region42: #{tpu_custom_call.1} parent=35 // pred_check_branch
          %253 = sbr.rel (%p251) target = $region44
        $region43: #{tpu_custom_call.1} parent=35 // pred_region
          %p254 = scmp.lt.s32.totalorder %s17, 2
          %s255 = scalar_select %p254, %s17, 2
          %s256 = scalar_lea.vmem %s6, %s255
        $region44: #{tpu_custom_call.1} parent=35 // pred_fallthru
          _
      $region36: #{tpu_custom_call.1} parent=5 // pred_fallthru
        _
      %p257 = scmp.le.s32.totalorder 1, %s17
      %p258 = scmp.lt.s32.totalorder %s17, 4
      %p259 = pnand %p257, %p258
      %p260 = pneg %p259
      // Predicated region
      $region45: #{tpu_custom_call.1} parent=5 // pred_check
        _
      $region46: #{tpu_custom_call.1} parent=5 // pred_check_branch
        %262 = sbr.rel (%p259) target = $region48
      $region47: #{tpu_custom_call.1} parent=5 // pred_region
        %s263 = ssub.s32 %s17, 1
        %s264 = sand.u32 %s135, 1
        %s265 = scalar_lea.sflag [#allocation3], %s264
        %s266 = sand.u32 %s135, 1
        %s267 = smul.addr %s266, 128
        %s268 = scalar_lea.vmem [#allocation2], %s267
        // Predicated region
        $region49: #{tpu_custom_call.1} parent=47 // pred_check
          %p269 = pneg %p148
        $region50: #{tpu_custom_call.1} parent=47 // pred_check_branch
          %271 = sbr.rel (%p269) target = $region52
        $region51: #{tpu_custom_call.1} parent=47 // pred_region
          %273 = dma.done %s265, 2048
        $region52: #{tpu_custom_call.1} parent=47 // pred_fallthru
          _
        %p274 = pneg %p38
        %p275 = pneg %p35
        %p276 = pneg %p59
        %p277 = pneg %p56
        %p278 = pneg %p80
        %p279 = pneg %p77
        %p280 = pneg %p101
        %p281 = pneg %p98
        %p282 = pneg %p122
        %p283 = pneg %p119
        %s284 = sand.u32 %s135, 1
        %s285 = scalar_lea.sflag [#allocation3], %s284
        %s286 = sand.u32 %s135, 1
        %s287 = smul.addr %s286, 128
        %s288 = scalar_lea.vmem [#allocation2], %s287
        %p289 = pneg %p148
        %p290 = pneg %p145
        %p291 = scmp.lt.s32.totalorder %s22, 2
        %s292 = scalar_select %p291, %s22, 2
        %s293 = scalar_lea.vmem %s6, %s292
        %p294 = pneg %p174
        %p295 = pneg %p171
        %p296 = pneg %p195
        %p297 = pneg %p192
        %p298 = scmp.lt.s32.totalorder %s22, 2
        %s299 = scalar_select %p298, %s22, 2
        %s300 = scalar_lea.vmem %s6, %s299
        %p301 = scmp.eq.s32.totalorder %s22, 0
        // Predicated region
        $region53: #{tpu_custom_call.1} parent=47 // pred_check
          %p302 = pneg %p301
        $region54: #{tpu_custom_call.1} parent=47 // pred_check_branch
          %304 = sbr.rel (%p302) target = $region56
        $region55: #{tpu_custom_call.1} parent=47 // pred_region
          %v305 = vld [vmem:[%s0] sm:$0xff]
          %v306 = vld [vmem:[%s0 + $0x8] sm:$0xff]
          %v307 = vld [vmem:[%s0 + $0x10] sm:$0xff]
          %v308 = vld [vmem:[%s0 + $0x18] sm:$0xff]
          %v309 = vld [vmem:[%s0 + $0x20] sm:$0xff]
          %v310 = vld [vmem:[%s0 + $0x28] sm:$0xff]
          %v311 = vld [vmem:[%s0 + $0x30] sm:$0xff]
          %v312 = vld [vmem:[%s0 + $0x38] sm:$0xff]
          %v313 = vld [vmem:[%s0 + $0x40] sm:$0xff]
          %v314 = vld [vmem:[%s0 + $0x48] sm:$0xff]
          %v315 = vld [vmem:[%s0 + $0x50] sm:$0xff]
          %v316 = vld [vmem:[%s0 + $0x58] sm:$0xff]
          %v317 = vld [vmem:[%s0 + $0x60] sm:$0xff]
          %v318 = vld [vmem:[%s0 + $0x68] sm:$0xff]
          %v319 = vld [vmem:[%s0 + $0x70] sm:$0xff]
          %v320 = vld [vmem:[%s0 + $0x78] sm:$0xff]
          %321 = vst [vmem:[#allocation5] sm:$0xff] %v305
          %322 = vst [vmem:[#allocation5 + $0x8] sm:$0xff] %v306
          %323 = vst [vmem:[#allocation5 + $0x10] sm:$0xff] %v307
          %324 = vst [vmem:[#allocation5 + $0x18] sm:$0xff] %v308
          %325 = vst [vmem:[#allocation5 + $0x20] sm:$0xff] %v309
          %326 = vst [vmem:[#allocation5 + $0x28] sm:$0xff] %v310
          %327 = vst [vmem:[#allocation5 + $0x30] sm:$0xff] %v311
          %328 = vst [vmem:[#allocation5 + $0x38] sm:$0xff] %v312
          %329 = vst [vmem:[#allocation5 + $0x40] sm:$0xff] %v313
          %330 = vst [vmem:[#allocation5 + $0x48] sm:$0xff] %v314
          %331 = vst [vmem:[#allocation5 + $0x50] sm:$0xff] %v315
          %332 = vst [vmem:[#allocation5 + $0x58] sm:$0xff] %v316
          %333 = vst [vmem:[#allocation5 + $0x60] sm:$0xff] %v317
          %334 = vst [vmem:[#allocation5 + $0x68] sm:$0xff] %v318
          %335 = vst [vmem:[#allocation5 + $0x70] sm:$0xff] %v319
          %336 = vst [vmem:[#allocation5 + $0x78] sm:$0xff] %v320
        $region56: #{tpu_custom_call.1} parent=47 // pred_fallthru
          _
        %v337 = vld [vmem:[#allocation5] sm:$0xff]
        %v338 = vld [vmem:[#allocation5 + $0x8] sm:$0xff]
        %v339 = vld [vmem:[#allocation5 + $0x10] sm:$0xff]
        %v340 = vld [vmem:[#allocation5 + $0x18] sm:$0xff]
        %v341 = vld [vmem:[#allocation5 + $0x20] sm:$0xff]
        %v342 = vld [vmem:[#allocation5 + $0x28] sm:$0xff]
        %v343 = vld [vmem:[#allocation5 + $0x30] sm:$0xff]
        %v344 = vld [vmem:[#allocation5 + $0x38] sm:$0xff]
        %v345 = vld [vmem:[#allocation5 + $0x40] sm:$0xff]
        %v346 = vld [vmem:[#allocation5 + $0x48] sm:$0xff]
        %v347 = vld [vmem:[#allocation5 + $0x50] sm:$0xff]
        %v348 = vld [vmem:[#allocation5 + $0x58] sm:$0xff]
        %v349 = vld [vmem:[#allocation5 + $0x60] sm:$0xff]
        %v350 = vld [vmem:[#allocation5 + $0x68] sm:$0xff]
        %v351 = vld [vmem:[#allocation5 + $0x70] sm:$0xff]
        %v352 = vld [vmem:[#allocation5 + $0x78] sm:$0xff]
        %v353 = vld [vmem:[%s268] sm:$0xff]
        %v354 = vld [vmem:[%s268 + $0x8] sm:$0xff]
        %v355 = vld [vmem:[%s268 + $0x10] sm:$0xff]
        %v356 = vld [vmem:[%s268 + $0x18] sm:$0xff]
        %v357 = vld [vmem:[%s268 + $0x20] sm:$0xff]
        %v358 = vld [vmem:[%s268 + $0x28] sm:$0xff]
        %v359 = vld [vmem:[%s268 + $0x30] sm:$0xff]
        %v360 = vld [vmem:[%s268 + $0x38] sm:$0xff]
        %v361 = vld [vmem:[%s268 + $0x40] sm:$0xff]
        %v362 = vld [vmem:[%s268 + $0x48] sm:$0xff]
        %v363 = vld [vmem:[%s268 + $0x50] sm:$0xff]
        %v364 = vld [vmem:[%s268 + $0x58] sm:$0xff]
        %v365 = vld [vmem:[%s268 + $0x60] sm:$0xff]
        %v366 = vld [vmem:[%s268 + $0x68] sm:$0xff]
        %v367 = vld [vmem:[%s268 + $0x70] sm:$0xff]
        %v368 = vld [vmem:[%s268 + $0x78] sm:$0xff]
        %v369 = vld [vmem:[%s300] sm:$0x1]
        %370 = vmatpush.msra.mxu0 %v368
        %371 = vmatpush.msra.mxu0 %v367
        %372 = vmatpush.msra.mxu0 %v366
        %373 = vmatpush.msra.mxu0 %v365
        %374 = vmatpush.msra.mxu0 %v364
        %375 = vmatpush.msra.mxu0 %v363
        %376 = vmatpush.msra.mxu0 %v362
        %377 = vmatpush.msra.mxu0 %v361
        %378 = vmatpush.msra.mxu0 %v360
        %379 = vmatpush.msra.mxu0 %v359
        %380 = vmatpush.msra.mxu0 %v358
        %381 = vmatpush.msra.mxu0 %v357
        %382 = vmatpush.msra.mxu0 %v356
        %383 = vmatpush.msra.mxu0 %v355
        %384 = vmatpush.msra.mxu0 %v354
        %385 = vmatpush.msra.mxu0 %v353
        %386 = vmatmul.f32.gmra.mxu0 %v337
        %v387 = vpop.f32.mrf.mxu0
        %v388 = vadd.f32 0.0, %v387
        %389 = vmatmul.f32.gmra.mxu0 %v338
        %v390 = vpop.f32.mrf.mxu0
        %v391 = vadd.f32 0.0, %v390
        %392 = vmatmul.f32.gmra.mxu0 %v339
        %v393 = vpop.f32.mrf.mxu0
        %v394 = vadd.f32 0.0, %v393
        %395 = vmatmul.f32.gmra.mxu0 %v340
        %v396 = vpop.f32.mrf.mxu0
        %v397 = vadd.f32 0.0, %v396
        %398 = vmatmul.f32.gmra.mxu0 %v341
        %v399 = vpop.f32.mrf.mxu0
        %v400 = vadd.f32 0.0, %v399
        %401 = vmatmul.f32.gmra.mxu0 %v342
        %v402 = vpop.f32.mrf.mxu0
        %v403 = vadd.f32 0.0, %v402
        %404 = vmatmul.f32.gmra.mxu0 %v343
        %v405 = vpop.f32.mrf.mxu0
        %v406 = vadd.f32 0.0, %v405
        %407 = vmatmul.f32.gmra.mxu0 %v344
        %v408 = vpop.f32.mrf.mxu0
        %v409 = vadd.f32 0.0, %v408
        %410 = vmatmul.f32.gmra.mxu0 %v345
        %v411 = vpop.f32.mrf.mxu0
        %v412 = vadd.f32 0.0, %v411
        %413 = vmatmul.f32.gmra.mxu0 %v346
        %v414 = vpop.f32.mrf.mxu0
        %v415 = vadd.f32 0.0, %v414
        %416 = vmatmul.f32.gmra.mxu0 %v347
        %v417 = vpop.f32.mrf.mxu0
        %v418 = vadd.f32 0.0, %v417
        %419 = vmatmul.f32.gmra.mxu0 %v348
        %v420 = vpop.f32.mrf.mxu0
        %v421 = vadd.f32 0.0, %v420
        %422 = vmatmul.f32.gmra.mxu0 %v349
        %v423 = vpop.f32.mrf.mxu0
        %v424 = vadd.f32 0.0, %v423
        %425 = vmatmul.f32.gmra.mxu0 %v350
        %v426 = vpop.f32.mrf.mxu0
        %v427 = vadd.f32 0.0, %v426
        %428 = vmatmul.f32.gmra.mxu0 %v351
        %v429 = vpop.f32.mrf.mxu0
        %v430 = vadd.f32 0.0, %v429
        %431 = vmatmul.f32.gmra.mxu0 %v352
        %v432 = vpop.f32.mrf.mxu0
        %v433 = vadd.f32 0.0, %v432
        %434 = vdwg.mxu0
        %v435 = vld [vmem:[%s2] sm:$0xf]
        %v436 = vld [vmem:[%s2 + $0x4] sm:$0xf]
        %v437 = vld [vmem:[%s2 + $0x8] sm:$0xf]
        %v438 = vld [vmem:[%s2 + $0xc] sm:$0xf]
        %v439 = vld [vmem:[%s2 + $0x10] sm:$0xf]
        %v440 = vld [vmem:[%s2 + $0x14] sm:$0xf]
        %v441 = vld [vmem:[%s2 + $0x18] sm:$0xf]
        %v442 = vld [vmem:[%s2 + $0x1c] sm:$0xf]
        %v443 = vld [vmem:[%s2 + $0x20] sm:$0xf]
        %v444 = vld [vmem:[%s2 + $0x24] sm:$0xf]
        %v445 = vld [vmem:[%s2 + $0x28] sm:$0xf]
        %v446 = vld [vmem:[%s2 + $0x2c] sm:$0xf]
        %v447 = vld [vmem:[%s2 + $0x30] sm:$0xf]
        %v448 = vld [vmem:[%s2 + $0x34] sm:$0xf]
        %v449 = vld [vmem:[%s2 + $0x38] sm:$0xf]
        %v450 = vld [vmem:[%s2 + $0x3c] sm:$0xf]
        %v451 = vpack.c.bf16 %v391, %v388
        %v452 = vpack.c.bf16 %v397, %v394
        %v453 = vpack.c.bf16 %v403, %v400
        %v454 = vpack.c.bf16 %v409, %v406
        %v455 = vpack.c.bf16 %v415, %v412
        %v456 = vpack.c.bf16 %v421, %v418
        %v457 = vpack.c.bf16 %v427, %v424
        %v458 = vpack.c.bf16 %v433, %v430
        %v475 = vunpack.c.l.b16 %v435
        %v476 = vunpack.c.l.b16 %v436
        %v477 = vunpack.c.l.b16 %v437
        %v478 = vunpack.c.l.b16 %v438
        %v479 = vunpack.c.l.b16 %v439
        %v480 = vunpack.c.l.b16 %v440
        %v481 = vunpack.c.l.b16 %v441
        %v482 = vunpack.c.l.b16 %v442
        %v483 = vunpack.c.l.b16 %v443
        %v484 = vunpack.c.l.b16 %v444
        %v485 = vunpack.c.l.b16 %v445
        %v486 = vunpack.c.l.b16 %v446
        %v487 = vunpack.c.l.b16 %v447
        %v488 = vunpack.c.l.b16 %v448
        %v489 = vunpack.c.l.b16 %v449
        %v490 = vunpack.c.l.b16 %v450
        %v491 = vpack.c.b16 %v476, %v475
        %v492 = vpack.c.b16 %v478, %v477
        %v493 = vpack.c.b16 %v480, %v479
        %v494 = vpack.c.b16 %v482, %v481
        %v495 = vpack.c.b16 %v484, %v483
        %v496 = vpack.c.b16 %v486, %v485
        %v497 = vpack.c.b16 %v488, %v487
        %v498 = vpack.c.b16 %v490, %v489
        %507 = vmatpush.bf16.msra.mxu0 %v458
        %508 = vmatpush.bf16.msra.mxu0 %v457
        %509 = vmatpush.bf16.msra.mxu0 %v456
        %510 = vmatpush.bf16.msra.mxu0 %v455
        %511 = vmatpush.bf16.msra.mxu0 %v454
        %512 = vmatpush.bf16.msra.mxu0 %v453
        %513 = vmatpush.bf16.msra.mxu0 %v452
        %514 = vmatpush.bf16.msra.mxu0 %v451
        %515 = vmatmul.bf16.gmra.mxu0 %v491
        %v516 = vpop.f32.mrf.mxu0
        %v517 = vadd.f32 0.0, %v516
        %v518 = vpop.f32.mrf.mxu0
        %v519 = vadd.f32 0.0, %v518
        %520 = vmatmul.bf16.gmra.mxu0 %v492
        %v521 = vpop.f32.mrf.mxu0
        %v522 = vadd.f32 0.0, %v521
        %v523 = vpop.f32.mrf.mxu0
        %v524 = vadd.f32 0.0, %v523
        %525 = vmatmul.bf16.gmra.mxu0 %v493
        %v526 = vpop.f32.mrf.mxu0
        %v527 = vadd.f32 0.0, %v526
        %v528 = vpop.f32.mrf.mxu0
        %v529 = vadd.f32 0.0, %v528
        %530 = vmatmul.bf16.gmra.mxu0 %v494
        %v531 = vpop.f32.mrf.mxu0
        %v532 = vadd.f32 0.0, %v531
        %v533 = vpop.f32.mrf.mxu0
        %v534 = vadd.f32 0.0, %v533
        %535 = vmatmul.bf16.gmra.mxu0 %v495
        %v536 = vpop.f32.mrf.mxu0
        %v537 = vadd.f32 0.0, %v536
        %v538 = vpop.f32.mrf.mxu0
        %v539 = vadd.f32 0.0, %v538
        %540 = vmatmul.bf16.gmra.mxu0 %v496
        %v541 = vpop.f32.mrf.mxu0
        %v542 = vadd.f32 0.0, %v541
        %v543 = vpop.f32.mrf.mxu0
        %v544 = vadd.f32 0.0, %v543
        %545 = vmatmul.bf16.gmra.mxu0 %v497
        %v546 = vpop.f32.mrf.mxu0
        %v547 = vadd.f32 0.0, %v546
        %v548 = vpop.f32.mrf.mxu0
        %v549 = vadd.f32 0.0, %v548
        %550 = vmatmul.bf16.gmra.mxu0 %v498
        %v551 = vpop.f32.mrf.mxu0
        %v552 = vadd.f32 0.0, %v551
        %v553 = vpop.f32.mrf.mxu0
        %v554 = vadd.f32 0.0, %v553
        %555 = vdwg.mxu0
        %v556 = vld [vmem:[%s4] sm:$0xff]
        %v557 = vld [vmem:[%s4 + $0x8] sm:$0xff]
        %v558 = vld [vmem:[%s4 + $0x10] sm:$0xff]
        %v559 = vld [vmem:[%s4 + $0x18] sm:$0xff]
        %v560 = vld [vmem:[%s4 + $0x20] sm:$0xff]
        %v561 = vld [vmem:[%s4 + $0x28] sm:$0xff]
        %v562 = vld [vmem:[%s4 + $0x30] sm:$0xff]
        %v563 = vld [vmem:[%s4 + $0x38] sm:$0xff]
        %v564 = vld [vmem:[%s4 + $0x40] sm:$0xff]
        %v565 = vld [vmem:[%s4 + $0x48] sm:$0xff]
        %v566 = vld [vmem:[%s4 + $0x50] sm:$0xff]
        %v567 = vld [vmem:[%s4 + $0x58] sm:$0xff]
        %v568 = vld [vmem:[%s4 + $0x60] sm:$0xff]
        %v569 = vld [vmem:[%s4 + $0x68] sm:$0xff]
        %v570 = vld [vmem:[%s4 + $0x70] sm:$0xff]
        %v571 = vld [vmem:[%s4 + $0x78] sm:$0xff]
        %573 = vset.pattern.permute.xlu0 0
        %574 = vperm.xlu0 %573, %v556
        %v575 = vpop.permute.xlu0 %574
        %578 = vset.pattern.permute.xlu0 0
        %579 = vperm.xlu0 %578, %v557
        %v580 = vpop.permute.xlu0 %579
        %583 = vset.pattern.permute.xlu0 0
        %584 = vperm.xlu0 %583, %v558
        %v585 = vpop.permute.xlu0 %584
        %588 = vset.pattern.permute.xlu0 0
        %589 = vperm.xlu0 %588, %v559
        %v590 = vpop.permute.xlu0 %589
        %593 = vset.pattern.permute.xlu0 0
        %594 = vperm.xlu0 %593, %v560
        %v595 = vpop.permute.xlu0 %594
        %598 = vset.pattern.permute.xlu0 0
        %599 = vperm.xlu0 %598, %v561
        %v600 = vpop.permute.xlu0 %599
        %603 = vset.pattern.permute.xlu0 0
        %604 = vperm.xlu0 %603, %v562
        %v605 = vpop.permute.xlu0 %604
        %608 = vset.pattern.permute.xlu0 0
        %609 = vperm.xlu0 %608, %v563
        %v610 = vpop.permute.xlu0 %609
        %613 = vset.pattern.permute.xlu0 0
        %614 = vperm.xlu0 %613, %v564
        %v615 = vpop.permute.xlu0 %614
        %618 = vset.pattern.permute.xlu0 0
        %619 = vperm.xlu0 %618, %v565
        %v620 = vpop.permute.xlu0 %619
        %623 = vset.pattern.permute.xlu0 0
        %624 = vperm.xlu0 %623, %v566
        %v625 = vpop.permute.xlu0 %624
        %628 = vset.pattern.permute.xlu0 0
        %629 = vperm.xlu0 %628, %v567
        %v630 = vpop.permute.xlu0 %629
        %633 = vset.pattern.permute.xlu0 0
        %634 = vperm.xlu0 %633, %v568
        %v635 = vpop.permute.xlu0 %634
        %638 = vset.pattern.permute.xlu0 0
        %639 = vperm.xlu0 %638, %v569
        %v640 = vpop.permute.xlu0 %639
        %643 = vset.pattern.permute.xlu0 0
        %644 = vperm.xlu0 %643, %v570
        %v645 = vpop.permute.xlu0 %644
        %648 = vset.pattern.permute.xlu0 0
        %649 = vperm.xlu0 %648, %v571
        %v650 = vpop.permute.xlu0 %649
        %v652 = vmul.f32 %v517, %v575
        %v653 = vmul.f32 %v519, %v580
        %v654 = vmul.f32 %v522, %v585
        %v655 = vmul.f32 %v524, %v590
        %v656 = vmul.f32 %v527, %v595
        %v657 = vmul.f32 %v529, %v600
        %v658 = vmul.f32 %v532, %v605
        %v659 = vmul.f32 %v534, %v610
        %v660 = vmul.f32 %v537, %v615
        %v661 = vmul.f32 %v539, %v620
        %v662 = vmul.f32 %v542, %v625
        %v663 = vmul.f32 %v544, %v630
        %v664 = vmul.f32 %v547, %v635
        %v665 = vmul.f32 %v549, %v640
        %v666 = vmul.f32 %v552, %v645
        %v667 = vmul.f32 %v554, %v650
        %v668 = vld [vmem:[%s1] sm:$0xf]
        %v669 = vld [vmem:[%s1 + $0x4] sm:$0xf]
        %v670 = vld [vmem:[%s1 + $0x8] sm:$0xf]
        %v671 = vld [vmem:[%s1 + $0xc] sm:$0xf]
        %v672 = vld [vmem:[%s1 + $0x10] sm:$0xf]
        %v673 = vld [vmem:[%s1 + $0x14] sm:$0xf]
        %v674 = vld [vmem:[%s1 + $0x18] sm:$0xf]
        %v675 = vld [vmem:[%s1 + $0x1c] sm:$0xf]
        %v676 = vld [vmem:[%s1 + $0x20] sm:$0xf]
        %v677 = vld [vmem:[%s1 + $0x24] sm:$0xf]
        %v678 = vld [vmem:[%s1 + $0x28] sm:$0xf]
        %v679 = vld [vmem:[%s1 + $0x2c] sm:$0xf]
        %v680 = vld [vmem:[%s1 + $0x30] sm:$0xf]
        %v681 = vld [vmem:[%s1 + $0x34] sm:$0xf]
        %v682 = vld [vmem:[%s1 + $0x38] sm:$0xf]
        %v683 = vld [vmem:[%s1 + $0x3c] sm:$0xf]
        %v684 = vpack.c.bf16 %v653, %v652
        %v685 = vpack.c.bf16 %v655, %v654
        %v686 = vpack.c.bf16 %v657, %v656
        %v687 = vpack.c.bf16 %v659, %v658
        %v688 = vpack.c.bf16 %v661, %v660
        %v689 = vpack.c.bf16 %v663, %v662
        %v690 = vpack.c.bf16 %v665, %v664
        %v691 = vpack.c.bf16 %v667, %v666
        %v708 = vunpack.c.l.b16 %v668
        %v709 = vunpack.c.l.b16 %v669
        %v710 = vunpack.c.l.b16 %v670
        %v711 = vunpack.c.l.b16 %v671
        %v712 = vunpack.c.l.b16 %v672
        %v713 = vunpack.c.l.b16 %v673
        %v714 = vunpack.c.l.b16 %v674
        %v715 = vunpack.c.l.b16 %v675
        %v716 = vunpack.c.l.b16 %v676
        %v717 = vunpack.c.l.b16 %v677
        %v718 = vunpack.c.l.b16 %v678
        %v719 = vunpack.c.l.b16 %v679
        %v720 = vunpack.c.l.b16 %v680
        %v721 = vunpack.c.l.b16 %v681
        %v722 = vunpack.c.l.b16 %v682
        %v723 = vunpack.c.l.b16 %v683
        %v724 = vpack.c.b16 %v709, %v708
        %v725 = vpack.c.b16 %v711, %v710
        %v726 = vpack.c.b16 %v713, %v712
        %v727 = vpack.c.b16 %v715, %v714
        %v728 = vpack.c.b16 %v717, %v716
        %v729 = vpack.c.b16 %v719, %v718
        %v730 = vpack.c.b16 %v721, %v720
        %v731 = vpack.c.b16 %v723, %v722
        %740 = vmatpush.bf16.msra.mxu0 %v691
        %741 = vmatpush.bf16.msra.mxu0 %v690
        %742 = vmatpush.bf16.msra.mxu0 %v689
        %743 = vmatpush.bf16.msra.mxu0 %v688
        %744 = vmatpush.bf16.msra.mxu0 %v687
        %745 = vmatpush.bf16.msra.mxu0 %v686
        %746 = vmatpush.bf16.msra.mxu0 %v685
        %747 = vmatpush.bf16.msra.mxu0 %v684
        %748 = vmatmul.bf16.gmra.mxu0 %v724
        %v749 = vpop.f32.mrf.mxu0
        %v750 = vadd.f32 0.0, %v749
        %v751 = vpop.f32.mrf.mxu0
        %v752 = vadd.f32 0.0, %v751
        %753 = vmatmul.bf16.gmra.mxu0 %v725
        %v754 = vpop.f32.mrf.mxu0
        %v755 = vadd.f32 0.0, %v754
        %v756 = vpop.f32.mrf.mxu0
        %v757 = vadd.f32 0.0, %v756
        %758 = vmatmul.bf16.gmra.mxu0 %v726
        %v759 = vpop.f32.mrf.mxu0
        %v760 = vadd.f32 0.0, %v759
        %v761 = vpop.f32.mrf.mxu0
        %v762 = vadd.f32 0.0, %v761
        %763 = vmatmul.bf16.gmra.mxu0 %v727
        %v764 = vpop.f32.mrf.mxu0
        %v765 = vadd.f32 0.0, %v764
        %v766 = vpop.f32.mrf.mxu0
        %v767 = vadd.f32 0.0, %v766
        %768 = vmatmul.bf16.gmra.mxu0 %v728
        %v769 = vpop.f32.mrf.mxu0
        %v770 = vadd.f32 0.0, %v769
        %v771 = vpop.f32.mrf.mxu0
        %v772 = vadd.f32 0.0, %v771
        %773 = vmatmul.bf16.gmra.mxu0 %v729
        %v774 = vpop.f32.mrf.mxu0
        %v775 = vadd.f32 0.0, %v774
        %v776 = vpop.f32.mrf.mxu0
        %v777 = vadd.f32 0.0, %v776
        %778 = vmatmul.bf16.gmra.mxu0 %v730
        %v779 = vpop.f32.mrf.mxu0
        %v780 = vadd.f32 0.0, %v779
        %v781 = vpop.f32.mrf.mxu0
        %v782 = vadd.f32 0.0, %v781
        %783 = vmatmul.bf16.gmra.mxu0 %v731
        %v784 = vpop.f32.mrf.mxu0
        %v785 = vadd.f32 0.0, %v784
        %v786 = vpop.f32.mrf.mxu0
        %v787 = vadd.f32 0.0, %v786
        %788 = vdwg.mxu0
        %v789 = vld [vmem:[%s3] sm:$0xff]
        %v790 = vld [vmem:[%s3 + $0x8] sm:$0xff]
        %v791 = vld [vmem:[%s3 + $0x10] sm:$0xff]
        %v792 = vld [vmem:[%s3 + $0x18] sm:$0xff]
        %v793 = vld [vmem:[%s3 + $0x20] sm:$0xff]
        %v794 = vld [vmem:[%s3 + $0x28] sm:$0xff]
        %v795 = vld [vmem:[%s3 + $0x30] sm:$0xff]
        %v796 = vld [vmem:[%s3 + $0x38] sm:$0xff]
        %v797 = vld [vmem:[%s3 + $0x40] sm:$0xff]
        %v798 = vld [vmem:[%s3 + $0x48] sm:$0xff]
        %v799 = vld [vmem:[%s3 + $0x50] sm:$0xff]
        %v800 = vld [vmem:[%s3 + $0x58] sm:$0xff]
        %v801 = vld [vmem:[%s3 + $0x60] sm:$0xff]
        %v802 = vld [vmem:[%s3 + $0x68] sm:$0xff]
        %v803 = vld [vmem:[%s3 + $0x70] sm:$0xff]
        %v804 = vld [vmem:[%s3 + $0x78] sm:$0xff]
        %806 = vset.pattern.permute.xlu0 0
        %807 = vperm.xlu0 %806, %v789
        %v808 = vpop.permute.xlu0 %807
        %811 = vset.pattern.permute.xlu0 0
        %812 = vperm.xlu0 %811, %v790
        %v813 = vpop.permute.xlu0 %812
        %816 = vset.pattern.permute.xlu0 0
        %817 = vperm.xlu0 %816, %v791
        %v818 = vpop.permute.xlu0 %817
        %821 = vset.pattern.permute.xlu0 0
        %822 = vperm.xlu0 %821, %v792
        %v823 = vpop.permute.xlu0 %822
        %826 = vset.pattern.permute.xlu0 0
        %827 = vperm.xlu0 %826, %v793
        %v828 = vpop.permute.xlu0 %827
        %831 = vset.pattern.permute.xlu0 0
        %832 = vperm.xlu0 %831, %v794
        %v833 = vpop.permute.xlu0 %832
        %836 = vset.pattern.permute.xlu0 0
        %837 = vperm.xlu0 %836, %v795
        %v838 = vpop.permute.xlu0 %837
        %841 = vset.pattern.permute.xlu0 0
        %842 = vperm.xlu0 %841, %v796
        %v843 = vpop.permute.xlu0 %842
        %846 = vset.pattern.permute.xlu0 0
        %847 = vperm.xlu0 %846, %v797
        %v848 = vpop.permute.xlu0 %847
        %851 = vset.pattern.permute.xlu0 0
        %852 = vperm.xlu0 %851, %v798
        %v853 = vpop.permute.xlu0 %852
        %856 = vset.pattern.permute.xlu0 0
        %857 = vperm.xlu0 %856, %v799
        %v858 = vpop.permute.xlu0 %857
        %861 = vset.pattern.permute.xlu0 0
        %862 = vperm.xlu0 %861, %v800
        %v863 = vpop.permute.xlu0 %862
        %866 = vset.pattern.permute.xlu0 0
        %867 = vperm.xlu0 %866, %v801
        %v868 = vpop.permute.xlu0 %867
        %871 = vset.pattern.permute.xlu0 0
        %872 = vperm.xlu0 %871, %v802
        %v873 = vpop.permute.xlu0 %872
        %876 = vset.pattern.permute.xlu0 0
        %877 = vperm.xlu0 %876, %v803
        %v878 = vpop.permute.xlu0 %877
        %881 = vset.pattern.permute.xlu0 0
        %882 = vperm.xlu0 %881, %v804
        %v883 = vpop.permute.xlu0 %882
        %v885 = vmul.f32 %v808, %v750
        %v886 = vmul.f32 %v813, %v752
        %v887 = vmul.f32 %v818, %v755
        %v888 = vmul.f32 %v823, %v757
        %v889 = vmul.f32 %v828, %v760
        %v890 = vmul.f32 %v833, %v762
        %v891 = vmul.f32 %v838, %v765
        %v892 = vmul.f32 %v843, %v767
        %v893 = vmul.f32 %v848, %v770
        %v894 = vmul.f32 %v853, %v772
        %v895 = vmul.f32 %v858, %v775
        %v896 = vmul.f32 %v863, %v777
        %v897 = vmul.f32 %v868, %v780
        %v898 = vmul.f32 %v873, %v782
        %v899 = vmul.f32 %v878, %v785
        %v900 = vmul.f32 %v883, %v787
        %v902 = vperm.slane %v369, 0
        %v904 = vadd.f32 %v885, %v902
        %v905 = vadd.f32 %v886, %v902
        %v906 = vadd.f32 %v887, %v902
        %v907 = vadd.f32 %v888, %v902
        %v908 = vadd.f32 %v889, %v902
        %v909 = vadd.f32 %v890, %v902
        %v910 = vadd.f32 %v891, %v902
        %v911 = vadd.f32 %v892, %v902
        %v912 = vadd.f32 %v893, %v902
        %v913 = vadd.f32 %v894, %v902
        %v914 = vadd.f32 %v895, %v902
        %v915 = vadd.f32 %v896, %v902
        %v916 = vadd.f32 %v897, %v902
        %v917 = vadd.f32 %v898, %v902
        %v918 = vadd.f32 %v899, %v902
        %v919 = vadd.f32 %v900, %v902
        %v920 = vmax.f32 %v904, 0.0
        %v921 = vmax.f32 %v905, 0.0
        %v922 = vmax.f32 %v906, 0.0
        %v923 = vmax.f32 %v907, 0.0
        %v924 = vmax.f32 %v908, 0.0
        %v925 = vmax.f32 %v909, 0.0
        %v926 = vmax.f32 %v910, 0.0
        %v927 = vmax.f32 %v911, 0.0
        %v928 = vmax.f32 %v912, 0.0
        %v929 = vmax.f32 %v913, 0.0
        %v930 = vmax.f32 %v914, 0.0
        %v931 = vmax.f32 %v915, 0.0
        %v932 = vmax.f32 %v916, 0.0
        %v933 = vmax.f32 %v917, 0.0
        %v934 = vmax.f32 %v918, 0.0
        %v935 = vmax.f32 %v919, 0.0
        %936 = vst [vmem:[#allocation5] sm:$0xff] %v920
        %937 = vst [vmem:[#allocation5 + $0x8] sm:$0xff] %v921
        %938 = vst [vmem:[#allocation5 + $0x10] sm:$0xff] %v922
        %939 = vst [vmem:[#allocation5 + $0x18] sm:$0xff] %v923
        %940 = vst [vmem:[#allocation5 + $0x20] sm:$0xff] %v924
        %941 = vst [vmem:[#allocation5 + $0x28] sm:$0xff] %v925
        %942 = vst [vmem:[#allocation5 + $0x30] sm:$0xff] %v926
        %943 = vst [vmem:[#allocation5 + $0x38] sm:$0xff] %v927
        %944 = vst [vmem:[#allocation5 + $0x40] sm:$0xff] %v928
        %945 = vst [vmem:[#allocation5 + $0x48] sm:$0xff] %v929
        %946 = vst [vmem:[#allocation5 + $0x50] sm:$0xff] %v930
        %947 = vst [vmem:[#allocation5 + $0x58] sm:$0xff] %v931
        %948 = vst [vmem:[#allocation5 + $0x60] sm:$0xff] %v932
        %949 = vst [vmem:[#allocation5 + $0x68] sm:$0xff] %v933
        %950 = vst [vmem:[#allocation5 + $0x70] sm:$0xff] %v934
        %951 = vst [vmem:[#allocation5 + $0x78] sm:$0xff] %v935
        // Predicated region
        $region57: #{tpu_custom_call.1} parent=47 // pred_check
          %p952 = pneg %p192
        $region58: #{tpu_custom_call.1} parent=47 // pred_check_branch
          %954 = sbr.rel (%p952) target = $region60
        $region59: #{tpu_custom_call.1} parent=47 // pred_region
          %956 = vsyncadd [#allocation4], 0
          %s957 = sshll.u32 [#allocation5], 4
          %s958 = int_to_ptr.vmem [resolvable:$true] %s957
          %s959 = sshll.u32 %s7, 4
          %s960 = int_to_ptr.hbm [resolvable:$true] %s959
          %965 = dma.vmem_to_hbm [thread:$0]  %s958, 2048, %s960, [#allocation4], 128, 128, 8
        $region60: #{tpu_custom_call.1} parent=47 // pred_fallthru
          _
        // Predicated region
        $region61: #{tpu_custom_call.1} parent=47 // pred_check
          %p966 = pneg %p192
        $region62: #{tpu_custom_call.1} parent=47 // pred_check_branch
          %968 = sbr.rel (%p966) target = $region64
        $region63: #{tpu_custom_call.1} parent=47 // pred_region
          %970 = dma.done [#allocation4], 2048
        $region64: #{tpu_custom_call.1} parent=47 // pred_fallthru
          _
      $region48: #{tpu_custom_call.1} parent=5 // pred_fallthru
        _
      %p971 = scmp.le.s32.totalorder 2, %s17
      // Predicated region
      $region65: #{tpu_custom_call.1} parent=5 // pred_check
        %p972 = pneg %p971
      $region66: #{tpu_custom_call.1} parent=5 // pred_check_branch
        %974 = sbr.rel (%p972) target = $region68
      $region67: #{tpu_custom_call.1} parent=5 // pred_region
        %s975 = ssub.s32 %s17, 2
      $region68: #{tpu_custom_call.1} parent=5 // pred_fallthru
        _
    $region6: #{tpu_custom_call.1} parent=1 // loop_footer
      %s21 = sadd.s32 1, %s17
    $region7: #{tpu_custom_call.1} parent=1 // loop_footer_branch
      %16 = sbr.rel target = $region3
    $region8: #{tpu_custom_call.1} parent=1 // loop_exit
      _
    %976 = vsyncpa [#allocation3], 1
    %s977 = scalar_lea.sflag [#allocation3], 1
    %978 = vsyncpa %s977, 1
    %979 = vsyncpa [#allocation4], 1
    %s980 = scalar_lea.sflag [#allocation4], 1
    %981 = vsyncpa %s980, 1

</llo_original>
